<compile_context>
chip_gen: v6e
topology: v6e:2x2x1
jax: 0.10.0
libtpu: 0.0.40
codegen_flags: <defaults>
</compile_context>

<pallas_src>
import functools

import jax
import jax.numpy as jnp
from jax import lax
from jax.experimental import pallas as pl
from jax.experimental.pallas import tpu as pltpu


# ----------------------------------------------------------------------------
# Generation-aware VMEM budgeting
# ----------------------------------------------------------------------------
def _vmem_budget():
    """Returns (vmem_limit_bytes, per-step working-set budget) for this chip."""
    try:
        cap = pltpu.get_tpu_info().vmem_capacity_bytes
    except Exception:
        cap = 64 * 1024 * 1024                       # conservative (v7x-sized) fallback
    vmem_limit = min(cap * 3 // 4, 96 * 1024 * 1024)  # v5e/v6e -> 96 MiB, v7x -> 48 MiB
    tile_budget = vmem_limit // 3                     # v5e/v6e -> 32 MiB, v7x -> 16 MiB
    return vmem_limit, tile_budget


def _pick_row_tile(N, Ho, Wo, Cin, Cout, tile_budget):
    """Largest divisor of Ho whose double-buffered working set fits the budget,
    preferring MXU-aligned tiles (THo*Wo % 256 == 0) and >= 2 grid steps (v7x megacore)."""
    fixed = 2 * (9 * Cin * Cout * 2 + 2 * (Wo + 1) * Cin * 2 + 2 * Cout * 4)

    def work(tho):
        in_main = 2 * 2 * tho * (Wo + 1) * Cin * 2    # bf16 parity-plane block
        y_out = tho * Wo * Cout * 2                   # bf16 conv-output block
        patches = tho * Wo * 9 * Cin * 2              # in-kernel im2col tile (bf16)
        acc = tho * Wo * Cout * 4                     # f32 accumulator
        return fixed + 2 * (in_main + y_out) + 2 * patches + acc

    divisors = [d for d in range(1, Ho + 1) if Ho % d == 0]
    fitting = [d for d in divisors if work(d) <= tile_budget] or [1]
    aligned = [d for d in fitting if (d * Wo) % 256 == 0 and d * Wo >= 512]
    tho = max(aligned) if aligned else max(fitting)
    # Megacore heuristic: v7x has 2 TensorCores -> make sure there are >= 2 grid steps.
    if N * (Ho // tho) < 2 and Ho > 1:
        smaller = [d for d in fitting if d <= Ho // 2]
        if smaller:
            tho = max(smaller)
    return tho


# ----------------------------------------------------------------------------
# Kernel 1: stride-2 3x3 conv via in-VMEM im2col -> ONE MXU dot (bf16 in / f32 acc),
#           no bias (cancels under training-mode BN), + per-tile channel sum / sum-sq.
# ----------------------------------------------------------------------------
def _conv_stats_kernel(xp_ref, hx_ref, w_ref, y_ref, sum_ref, ssq_ref):
    # xp_ref : (2, 2, THo, Wo+1, Cin) bf16  -- (row-parity, col-parity) planes of the
    #          reflect-padded input for this row tile (contiguous reads only).
    # hx_ref : (2, Wo+1, Cin)         bf16  -- 1-row halo of the even-row planes
    #          (global row t*THo+THo), supplied by a second BlockSpec (no host copy).
    # w_ref  : (9*Cin, Cout)          bf16  -- conv weights, tap-major (kh*3+kw, cin).
    # y_ref  : (THo, Wo, Cout)        bf16  -- conv output tile.
    # sum_ref/ssq_ref : (1, Cout)     f32   -- per-tile channel statistics (from f32 acc).
    tho, wo, cout = y_ref.shape
    cin = xp_ref.shape[-1]

    xp = xp_ref[...]
    hx = hx_ref[...]
    ee, eo = xp[0, 0], xp[0, 1]                         # even-row planes (THo, Wo+1, Cin)
    oe, oo = xp[1, 0], xp[1, 1]                         # odd-row planes
    ee_n = jnp.concatenate([ee[1:], hx[0:1]], axis=0)   # even rows shifted by one (+halo)
    eo_n = jnp.concatenate([eo[1:], hx[1:2]], axis=0)

    # tap (kh, kw) of the 3x3/stride-2 conv, each (THo, Wo, Cin); lane-concat -> im2col.
    taps = (ee[:, :wo], eo[:, :wo], ee[:, 1:wo + 1],        # kh = 0
            oe[:, :wo], oo[:, :wo], oe[:, 1:wo + 1],        # kh = 1
            ee_n[:, :wo], eo_n[:, :wo], ee_n[:, 1:wo + 1])  # kh = 2
    patches = jnp.concatenate(taps, axis=-1).reshape(tho * wo, 9 * cin)

    acc = jnp.dot(patches, w_ref[...], preferred_element_type=jnp.float32)

    y_ref[...] = acc.reshape(tho, wo, cout).astype(y_ref.dtype)
    sum_ref[...] = jnp.sum(acc, axis=0, keepdims=True)
    ssq_ref[...] = jnp.sum(acc * acc, axis=0, keepdims=True)


# ----------------------------------------------------------------------------
# Kernel 2: batch-norm affine (precomputed per-channel scale/shift) + ReLU / LeakyReLU.
# ----------------------------------------------------------------------------
def _bn_act_kernel(y_ref, scale_ref, shift_ref, o_ref, *, slope):
    z = y_ref[...].astype(jnp.float32) * scale_ref[...] + shift_ref[...]
    o_ref[...] = jnp.where(z > 0, z, slope * z)          # slope=0.0 -> ReLU


# ----------------------------------------------------------------------------
# Core forward (NHWC). Chain Down blocks through this to stay layout-pass free.
# ----------------------------------------------------------------------------
def _down_forward_nhwc(x_nhwc, weight, gamma, beta, *, act, eps=1e-5):
    N, H, W, Cin = x_nhwc.shape
    Cout = weight.shape[0]
    Ho = (H - 1) // 2 + 1
    Wo = (W - 1) // 2 + 1

    vmem_limit, tile_budget = _vmem_budget()
    THo = _pick_row_tile(N, Ho, Wo, Cin, Cout, tile_budget)
    HT = Ho // THo

    # --- glue: reflect pad + (row, col) parity split, bf16; no im2col / halo copies ---
    xpad = jnp.pad(x_nhwc.astype(jnp.bfloat16), ((0, 0), (1, 1), (1, 1), (0, 0)),
                   mode="reflect")

    def plane(rp, cp):                                   # (N, Ho+1, Wo+1, Cin)
        p = xpad[:, rp::2, cp::2, :]
        return jnp.pad(p, ((0, 0), (0, Ho + 1 - p.shape[1]),
                           (0, Wo + 1 - p.shape[2]), (0, 0)))   # pad rows/cols never read

    planes = jnp.stack([jnp.stack([plane(0, 0), plane(0, 1)], axis=1),
                        jnp.stack([plane(1, 0), plane(1, 1)], axis=1)], axis=1)
    # planes: (N, 2_rowpar, 2_colpar, Ho+1, Wo+1, Cin) bf16

    # conv weights (Cout, Cin, 3, 3) -> (9*Cin, Cout), tap-major; bias not needed.
    w_mat = jnp.transpose(weight, (2, 3, 1, 0)).reshape(9 * Cin, Cout).astype(jnp.bfloat16)

    # --- Pallas pass 1: conv (single im2col dot) + per-tile channel stats ---
    conv_fn = pl.pallas_call(
        _conv_stats_kernel,
        out_shape=(
            jax.ShapeDtypeStruct((N, Ho, Wo, Cout), jnp.bfloat16),
            jax.ShapeDtypeStruct((N, HT, 1, Cout), jnp.float32),
            jax.ShapeDtypeStruct((N, HT, 1, Cout), jnp.float32),
        ),
        grid=(N, HT),
        in_specs=[
            pl.BlockSpec((None, 2, 2, THo, Wo + 1, Cin),
                         lambda n, t: (n, 0, 0, t, 0, 0)),
            # 1-row halo of the even-row planes: same array, 1-row block, no host copy.
            pl.BlockSpec((None, None, 2, None, Wo + 1, Cin),
                         lambda n, t: (n, 0, 0, (t + 1) * THo, 0, 0)),
            pl.BlockSpec((9 * Cin, Cout), lambda n, t: (0, 0)),
        ],
        out_specs=(
            pl.BlockSpec((None, THo, Wo, Cout), lambda n, t: (n, t, 0, 0)),
            pl.BlockSpec((None, None, 1, Cout), lambda n, t: (n, t, 0, 0)),
            pl.BlockSpec((None, None, 1, Cout), lambda n, t: (n, t, 0, 0)),
        ),
        compiler_params=pltpu.CompilerParams(
            dimension_semantics=("parallel", "parallel"),
            vmem_limit_bytes=vmem_limit),
    )
    y, sums, ssqs = conv_fn(planes, planes, w_mat)

    # --- tiny per-channel BN-statistics finalization (glue, f32) ---
    count = N * Ho * Wo
    mean = jnp.sum(sums, axis=(0, 1, 2)) / count
    var = jnp.maximum(jnp.sum(ssqs, axis=(0, 1, 2)) / count - mean * mean, 0.0)
    inv_std = lax.rsqrt(var + eps)
    scale = (gamma * inv_std).reshape(1, Cout).astype(jnp.float32)
    shift = (beta - mean * gamma * inv_std).reshape(1, Cout).astype(jnp.float32)

    # --- Pallas pass 2: normalize + activation ---
    slope = 0.0 if act == "relu" else 0.2
    bn_fn = pl.pallas_call(
        functools.partial(_bn_act_kernel, slope=slope),
        out_shape=jax.ShapeDtypeStruct((N, Ho, Wo, Cout), jnp.float32),
        grid=(N, HT),
        in_specs=[
            pl.BlockSpec((None, THo, Wo, Cout), lambda n, t: (n, t, 0, 0)),
            pl.BlockSpec((1, Cout), lambda n, t: (0, 0)),
            pl.BlockSpec((1, Cout), lambda n, t: (0, 0)),
        ],
        out_specs=pl.BlockSpec((None, THo, Wo, Cout), lambda n, t: (n, t, 0, 0)),
        compiler_params=pltpu.CompilerParams(
            dimension_semantics=("parallel", "parallel"),
            vmem_limit_bytes=vmem_limit),
    )
    return bn_fn(y, scale, shift)                        # (N, Ho, Wo, Cout) f32


@functools.partial(jax.jit, static_argnames=("act", "use_dropout"))
def down_forward(x_nchw, weight, bias, gamma, beta, *, act="relu", use_dropout=False):
    """PyTorch-layout wrapper: (N, Cin, H, W) f32 -> (N, Cout, Ho, Wo) f32.

    The NCHW<->NHWC transposes here are model-boundary glue: when chaining Down blocks
    (the Generator encoder) call `_down_forward_nhwc` directly and keep activations NHWC
    so no per-layer layout pass is paid.
    """
    assert not use_dropout  # TODO(synk): training-mode Dropout(0.2) path not implemented.
    del bias  # conv bias cancels exactly under training-mode BatchNorm -> same output.
    x_nhwc = jnp.transpose(x_nchw, (0, 2, 3, 1))
    out = _down_forward_nhwc(x_nhwc, weight, gamma, beta, act=act)
    return jnp.transpose(out, (0, 3, 1, 2))


# ----------------------------------------------------------------------------
# Pure-JAX reference (sanity check); includes the conv bias, full f32 precision.
# ----------------------------------------------------------------------------
def down_forward_ref(x_nchw, weight, bias, gamma, beta, *, act="relu"):
    xpad = jnp.pad(x_nchw, ((0, 0), (0, 0), (1, 1), (1, 1)), mode="reflect")
    y = lax.conv_general_dilated(
        xpad, weight, window_strides=(2, 2), padding="VALID",
        dimension_numbers=("NCHW", "OIHW", "NCHW"),
        precision=lax.Precision.HIGHEST,
    ) + bias.reshape(1, -1, 1, 1)
    mean = jnp.mean(y, axis=(0, 2, 3), keepdims=True)
    var = jnp.mean((y - mean) ** 2, axis=(0, 2, 3), keepdims=True)
    z = (y - mean) / jnp.sqrt(var + 1e-5)
    z = z * gamma.reshape(1, -1, 1, 1) + beta.reshape(1, -1, 1, 1)
    slope = 0.0 if act == "relu" else 0.2
    return jnp.where(z > 0, z, slope * z)


if __name__ == "__main__":
    # Down(in_channels=4, out_channels=8), as used inside Generator (act='Leaky').
    N, Cin, Cout, H, W = 2, 4, 8, 16, 16

    key = jax.random.PRNGKey(0)
    kx, kw_, kb = jax.random.split(key, 3)
    x = jax.random.normal(kx, (N, Cin, H, W), dtype=jnp.float32)
    fan_in = Cin * 3 * 3
    weight = jax.random.normal(kw_, (Cout, Cin, 3, 3), dtype=jnp.float32) / jnp.sqrt(fan_in)
    bias = 0.1 * jax.random.normal(kb, (Cout,), dtype=jnp.float32)
    gamma = jnp.ones((Cout,), dtype=jnp.float32)   # BatchNorm2d default init
    beta = jnp.zeros((Cout,), dtype=jnp.float32)

    for act in ("Leaky", "relu"):
        out = down_forward(x, weight, bias, gamma, beta, act=act, use_dropout=False)
        out = jax.block_until_ready(out)
        ref = down_forward_ref(x, weight, bias, gamma, beta, act=act)
        assert out.shape == (N, Cout, H // 2, W // 2), out.shape
        err = float(jnp.max(jnp.abs(out - ref)))
        # bf16 matmul inputs + bf16 conv intermediate vs. full-f32 reference.
        assert err < 6e-2, f"act={act} max_abs_err={err}"

    print("KERNEL_OK")
</pallas_src>

<mosaic_0001>
module attributes {stable_mosaic.version = 11 : i64} {
  func.func @_conv_stats_kernel(%arg0: i32, %arg1: i32, %arg2: memref<1x2x2x8x9x4xbf16, #tpu.memory_space<vmem>>, %arg3: memref<1x1x2x1x9x4xbf16, #tpu.memory_space<vmem>>, %arg4: memref<36x8xbf16, #tpu.memory_space<vmem>>, %arg5: memref<1x8x8x8xbf16, #tpu.memory_space<vmem>>, %arg6: memref<1x1x1x8xf32, #tpu.memory_space<vmem>>, %arg7: memref<1x1x1x8xf32, #tpu.memory_space<vmem>>) attributes {dimension_semantics = [#tpu.dimension_semantics<parallel>, #tpu.dimension_semantics<parallel>], iteration_bounds = array<i64: 2, 1>, scalar_prefetch = 0 : i64, scratch_operands = 0 : i64, tpu.core_type = #tpu.core_type<tc>, window_params = [{transform_indices = @transform_0, window_bounds = array<i64: 1, 2, 2, 8, 9, 4>}, {transform_indices = @transform_1, window_bounds = array<i64: 1, 1, 2, 1, 9, 4>}, {pipeline_mode = #tpu.pipeline_mode<synchronous>, transform_indices = @transform_2, window_bounds = array<i64: 36, 8>}, {transform_indices = @transform_3, window_bounds = array<i64: 1, 8, 8, 8>}, {transform_indices = @transform_4, window_bounds = array<i64: 1, 1, 1, 8>}, {transform_indices = @transform_5, window_bounds = array<i64: 1, 1, 1, 8>}]} {
    %c0 = arith.constant 0 : index
    %c0_0 = arith.constant 0 : index
    %c0_1 = arith.constant 0 : index
    %c0_2 = arith.constant 0 : index
    %c0_3 = arith.constant 0 : index
    %c0_4 = arith.constant 0 : index
    %0 = vector.load %arg2[%c0, %c0_0, %c0_1, %c0_2, %c0_3, %c0_4] : memref<1x2x2x8x9x4xbf16, #tpu.memory_space<vmem>>, vector<1x2x2x8x9x4xbf16>
    %1 = vector.shape_cast %0 : vector<1x2x2x8x9x4xbf16> to vector<2x2x8x9x4xbf16>
    %c0_5 = arith.constant 0 : index
    %c0_6 = arith.constant 0 : index
    %c0_7 = arith.constant 0 : index
    %c0_8 = arith.constant 0 : index
    %c0_9 = arith.constant 0 : index
    %c0_10 = arith.constant 0 : index
    %2 = vector.load %arg3[%c0_5, %c0_6, %c0_7, %c0_8, %c0_9, %c0_10] : memref<1x1x2x1x9x4xbf16, #tpu.memory_space<vmem>>, vector<1x1x2x1x9x4xbf16>
    %3 = vector.shape_cast %2 : vector<1x1x2x1x9x4xbf16> to vector<2x9x4xbf16>
    %4 = vector.extract_strided_slice %1 {offsets = [0, 0, 0, 0, 0], sizes = [1, 1, 8, 9, 4], strides = [1, 1, 1, 1, 1]} : vector<2x2x8x9x4xbf16> to vector<1x1x8x9x4xbf16>
    %5 = vector.shape_cast %4 : vector<1x1x8x9x4xbf16> to vector<8x9x4xbf16>
    %6 = vector.extract_strided_slice %1 {offsets = [0, 1, 0, 0, 0], sizes = [1, 1, 8, 9, 4], strides = [1, 1, 1, 1, 1]} : vector<2x2x8x9x4xbf16> to vector<1x1x8x9x4xbf16>
    %7 = vector.shape_cast %6 : vector<1x1x8x9x4xbf16> to vector<8x9x4xbf16>
    %8 = vector.extract_strided_slice %1 {offsets = [1, 0, 0, 0, 0], sizes = [1, 1, 8, 9, 4], strides = [1, 1, 1, 1, 1]} : vector<2x2x8x9x4xbf16> to vector<1x1x8x9x4xbf16>
    %9 = vector.shape_cast %8 : vector<1x1x8x9x4xbf16> to vector<8x9x4xbf16>
    %10 = vector.extract_strided_slice %1 {offsets = [1, 1, 0, 0, 0], sizes = [1, 1, 8, 9, 4], strides = [1, 1, 1, 1, 1]} : vector<2x2x8x9x4xbf16> to vector<1x1x8x9x4xbf16>
    %11 = vector.shape_cast %10 : vector<1x1x8x9x4xbf16> to vector<8x9x4xbf16>
    %12 = vector.extract_strided_slice %5 {offsets = [1, 0, 0], sizes = [7, 9, 4], strides = [1, 1, 1]} : vector<8x9x4xbf16> to vector<7x9x4xbf16>
    %13 = vector.extract_strided_slice %3 {offsets = [0, 0, 0], sizes = [1, 9, 4], strides = [1, 1, 1]} : vector<2x9x4xbf16> to vector<1x9x4xbf16>
    %14 = tpu.concatenate %12, %13 in 0 : vector<7x9x4xbf16>, vector<1x9x4xbf16> -> vector<8x9x4xbf16>
    %15 = vector.extract_strided_slice %7 {offsets = [1, 0, 0], sizes = [7, 9, 4], strides = [1, 1, 1]} : vector<8x9x4xbf16> to vector<7x9x4xbf16>
    %16 = vector.extract_strided_slice %3 {offsets = [1, 0, 0], sizes = [1, 9, 4], strides = [1, 1, 1]} : vector<2x9x4xbf16> to vector<1x9x4xbf16>
    %17 = tpu.concatenate %15, %16 in 0 : vector<7x9x4xbf16>, vector<1x9x4xbf16> -> vector<8x9x4xbf16>
    %18 = vector.extract_strided_slice %5 {offsets = [0, 0, 0], sizes = [8, 8, 4], strides = [1, 1, 1]} : vector<8x9x4xbf16> to vector<8x8x4xbf16>
    %19 = vector.extract_strided_slice %7 {offsets = [0, 0, 0], sizes = [8, 8, 4], strides = [1, 1, 1]} : vector<8x9x4xbf16> to vector<8x8x4xbf16>
    %20 = vector.extract_strided_slice %5 {offsets = [0, 1, 0], sizes = [8, 8, 4], strides = [1, 1, 1]} : vector<8x9x4xbf16> to vector<8x8x4xbf16>
    %21 = vector.extract_strided_slice %9 {offsets = [0, 0, 0], sizes = [8, 8, 4], strides = [1, 1, 1]} : vector<8x9x4xbf16> to vector<8x8x4xbf16>
    %22 = vector.extract_strided_slice %11 {offsets = [0, 0, 0], sizes = [8, 8, 4], strides = [1, 1, 1]} : vector<8x9x4xbf16> to vector<8x8x4xbf16>
    %23 = vector.extract_strided_slice %9 {offsets = [0, 1, 0], sizes = [8, 8, 4], strides = [1, 1, 1]} : vector<8x9x4xbf16> to vector<8x8x4xbf16>
    %24 = vector.extract_strided_slice %14 {offsets = [0, 0, 0], sizes = [8, 8, 4], strides = [1, 1, 1]} : vector<8x9x4xbf16> to vector<8x8x4xbf16>
    %25 = vector.extract_strided_slice %17 {offsets = [0, 0, 0], sizes = [8, 8, 4], strides = [1, 1, 1]} : vector<8x9x4xbf16> to vector<8x8x4xbf16>
    %26 = vector.extract_strided_slice %14 {offsets = [0, 1, 0], sizes = [8, 8, 4], strides = [1, 1, 1]} : vector<8x9x4xbf16> to vector<8x8x4xbf16>
    %27 = tpu.concatenate %18, %19, %20, %21, %22, %23, %24, %25, %26 in 2 : vector<8x8x4xbf16>, vector<8x8x4xbf16>, vector<8x8x4xbf16>, vector<8x8x4xbf16>, vector<8x8x4xbf16>, vector<8x8x4xbf16>, vector<8x8x4xbf16>, vector<8x8x4xbf16>, vector<8x8x4xbf16> -> vector<8x8x36xbf16>
    %28 = vector.shape_cast %27 : vector<8x8x36xbf16> to vector<64x36xbf16>
    %c0_11 = arith.constant 0 : index
    %c0_12 = arith.constant 0 : index
    %29 = vector.load %arg4[%c0_11, %c0_12] : memref<36x8xbf16, #tpu.memory_space<vmem>>, vector<36x8xbf16>
    %cst = arith.constant dense<0.000000e+00> : vector<64x8xf32>
    %30 = tpu.matmul %28, %29, %cst {dimension_numbers = #tpu.dot_dimension_numbers<[1], [0], [0], [1], [0, 0, 1, 1], [], []>} : vector<64x36xbf16>, vector<36x8xbf16>, vector<64x8xf32> -> vector<64x8xf32>
    %31 = vector.shape_cast %30 : vector<64x8xf32> to vector<8x8x8xf32>
    %32 = arith.truncf %31 : vector<8x8x8xf32> to vector<8x8x8xbf16>
    %c0_13 = arith.constant 0 : index
    %c0_14 = arith.constant 0 : index
    %c0_15 = arith.constant 0 : index
    %c0_16 = arith.constant 0 : index
    %33 = vector.load %arg5[%c0_13, %c0_14, %c0_15, %c0_16] : memref<1x8x8x8xbf16, #tpu.memory_space<vmem>>, vector<1x8x8x8xbf16>
    %34 = vector.shape_cast %33 : vector<1x8x8x8xbf16> to vector<8x8x8xbf16>
    %35 = vector.shape_cast %32 : vector<8x8x8xbf16> to vector<1x8x8x8xbf16>
    tpu.vector_store %arg5[%c0_13, %c0_14, %c0_15, %c0_16], %35 {strides = array<i32>} : memref<1x8x8x8xbf16, #tpu.memory_space<vmem>>, vector<1x8x8x8xbf16>,
    %cst_17 = arith.constant dense<0.000000e+00> : vector<8xf32>
    %36 = vector.multi_reduction <add>, %30, %cst_17 [0] : vector<64x8xf32> to vector<8xf32>
    %37 = vector.shape_cast %36 : vector<8xf32> to vector<1x8xf32>
    %c0_18 = arith.constant 0 : index
    %c0_19 = arith.constant 0 : index
    %c0_20 = arith.constant 0 : index
    %c0_21 = arith.constant 0 : index
    %38 = vector.load %arg6[%c0_18, %c0_19, %c0_20, %c0_21] : memref<1x1x1x8xf32, #tpu.memory_space<vmem>>, vector<1x1x1x8xf32>
    %39 = vector.shape_cast %38 : vector<1x1x1x8xf32> to vector<1x8xf32>
    %40 = vector.shape_cast %37 : vector<1x8xf32> to vector<1x1x1x8xf32>
    tpu.vector_store %arg6[%c0_18, %c0_19, %c0_20, %c0_21], %40 {strides = array<i32>} : memref<1x1x1x8xf32, #tpu.memory_space<vmem>>, vector<1x1x1x8xf32>,
    %41 = arith.mulf %30, %30 : vector<64x8xf32>
    %cst_22 = arith.constant dense<0.000000e+00> : vector<8xf32>
    %42 = vector.multi_reduction <add>, %41, %cst_22 [0] : vector<64x8xf32> to vector<8xf32>
    %43 = vector.shape_cast %42 : vector<8xf32> to vector<1x8xf32>
    %c0_23 = arith.constant 0 : index
    %c0_24 = arith.constant 0 : index
    %c0_25 = arith.constant 0 : index
    %c0_26 = arith.constant 0 : index
    %44 = vector.load %arg7[%c0_23, %c0_24, %c0_25, %c0_26] : memref<1x1x1x8xf32, #tpu.memory_space<vmem>>, vector<1x1x1x8xf32>
    %45 = vector.shape_cast %44 : vector<1x1x1x8xf32> to vector<1x8xf32>
    %46 = vector.shape_cast %43 : vector<1x8xf32> to vector<1x1x1x8xf32>
    tpu.vector_store %arg7[%c0_23, %c0_24, %c0_25, %c0_26], %46 {strides = array<i32>} : memref<1x1x1x8xf32, #tpu.memory_space<vmem>>, vector<1x1x1x8xf32>,
    return
  }
  func.func @transform_0(%arg0: i32, %arg1: i32) -> (i32, i32, i32, i32, i32, i32) {
    %c0_i32 = arith.constant 0 : i32
    %c0_i32_0 = arith.constant 0 : i32
    %c0_i32_1 = arith.constant 0 : i32
    %c0_i32_2 = arith.constant 0 : i32
    %c0_i32_3 = arith.constant 0 : i32
    return %arg0, %c0_i32, %c0_i32_0, %arg1, %c0_i32_1, %c0_i32_2 : i32, i32, i32, i32, i32, i32
  }
  func.func @transform_1(%arg0: i32, %arg1: i32) -> (i32, i32, i32, i32, i32, i32) {
    %c1_i32 = arith.constant 1 : i32
    %0 = arith.addi %arg1, %c1_i32 : i32
    %c8_i32 = arith.constant 8 : i32
    %1 = arith.muli %0, %c8_i32 : i32
    %c0_i32 = arith.constant 0 : i32
    %c0_i32_0 = arith.constant 0 : i32
    %c0_i32_1 = arith.constant 0 : i32
    %c0_i32_2 = arith.constant 0 : i32
    %c0_i32_3 = arith.constant 0 : i32
    return %arg0, %c0_i32, %c0_i32_0, %1, %c0_i32_1, %c0_i32_2 : i32, i32, i32, i32, i32, i32
  }
  func.func @transform_2(%arg0: i32, %arg1: i32) -> (i32, i32) {
    %c0_i32 = arith.constant 0 : i32
    %c0_i32_0 = arith.constant 0 : i32
    %c0_i32_1 = arith.constant 0 : i32
    return %c0_i32, %c0_i32_0 : i32, i32
  }
  func.func @transform_3(%arg0: i32, %arg1: i32) -> (i32, i32, i32, i32) {
    %c0_i32 = arith.constant 0 : i32
    %c0_i32_0 = arith.constant 0 : i32
    %c0_i32_1 = arith.constant 0 : i32
    return %arg0, %arg1, %c0_i32, %c0_i32_0 : i32, i32, i32, i32
  }
  func.func @transform_4(%arg0: i32, %arg1: i32) -> (i32, i32, i32, i32) {
    %c0_i32 = arith.constant 0 : i32
    %c0_i32_0 = arith.constant 0 : i32
    %c0_i32_1 = arith.constant 0 : i32
    return %arg0, %arg1, %c0_i32, %c0_i32_0 : i32, i32, i32, i32
  }
  func.func @transform_5(%arg0: i32, %arg1: i32) -> (i32, i32, i32, i32) {
    %c0_i32 = arith.constant 0 : i32
    %c0_i32_0 = arith.constant 0 : i32
    %c0_i32_1 = arith.constant 0 : i32
    return %arg0, %arg1, %c0_i32, %c0_i32_0 : i32, i32, i32, i32
  }
}

module attributes {stable_mosaic.version = 11 : i64} {
  func.func @_bn_act_kernel(%arg0: i32, %arg1: i32, %arg2: memref<1x8x8x8xbf16, #tpu.memory_space<vmem>>, %arg3: memref<1x8xf32, #tpu.memory_space<vmem>>, %arg4: memref<1x8xf32, #tpu.memory_space<vmem>>, %arg5: memref<1x8x8x8xf32, #tpu.memory_space<vmem>>) attributes {dimension_semantics = [#tpu.dimension_semantics<parallel>, #tpu.dimension_semantics<parallel>], iteration_bounds = array<i64: 2, 1>, scalar_prefetch = 0 : i64, scratch_operands = 0 : i64, tpu.core_type = #tpu.core_type<tc>, window_params = [{transform_indices = @transform_0, window_bounds = array<i64: 1, 8, 8, 8>}, {pipeline_mode = #tpu.pipeline_mode<synchronous>, transform_indices = @transform_1, window_bounds = array<i64: 1, 8>}, {pipeline_mode = #tpu.pipeline_mode<synchronous>, transform_indices = @transform_2, window_bounds = array<i64: 1, 8>}, {transform_indices = @transform_3, window_bounds = array<i64: 1, 8, 8, 8>}]} {
    %c0 = arith.constant 0 : index
    %c0_0 = arith.constant 0 : index
    %c0_1 = arith.constant 0 : index
    %c0_2 = arith.constant 0 : index
    %0 = vector.load %arg2[%c0, %c0_0, %c0_1, %c0_2] : memref<1x8x8x8xbf16, #tpu.memory_space<vmem>>, vector<1x8x8x8xbf16>
    %1 = vector.shape_cast %0 : vector<1x8x8x8xbf16> to vector<8x8x8xbf16>
    %2 = arith.extf %1 : vector<8x8x8xbf16> to vector<8x8x8xf32>
    %c0_3 = arith.constant 0 : index
    %c0_4 = arith.constant 0 : index
    %3 = vector.load %arg3[%c0_3, %c0_4] : memref<1x8xf32, #tpu.memory_space<vmem>>, vector<1x8xf32>
    %4 = vector.shape_cast %3 : vector<1x8xf32> to vector<1x1x8xf32>
    %5 = vector.broadcast %4 : vector<1x1x8xf32> to vector<8x8x8xf32>
    %6 = arith.mulf %2, %5 : vector<8x8x8xf32>
    %c0_5 = arith.constant 0 : index
    %c0_6 = arith.constant 0 : index
    %7 = vector.load %arg4[%c0_5, %c0_6] : memref<1x8xf32, #tpu.memory_space<vmem>>, vector<1x8xf32>
    %8 = vector.shape_cast %7 : vector<1x8xf32> to vector<1x1x8xf32>
    %9 = vector.broadcast %8 : vector<1x1x8xf32> to vector<8x8x8xf32>
    %10 = arith.addf %6, %9 : vector<8x8x8xf32>
    %cst = arith.constant 0.000000e+00 : f32
    %11 = vector.broadcast %cst : f32 to vector<8x8x8xf32>
    %12 = arith.cmpf ogt, %10, %11 : vector<8x8x8xf32>
    %cst_7 = arith.constant 2.000000e-01 : f32
    %13 = vector.broadcast %cst_7 : f32 to vector<8x8x8xf32>
    %14 = arith.mulf %13, %10 : vector<8x8x8xf32>
    %15 = arith.select %12, %10, %14 : vector<8x8x8xi1>, vector<8x8x8xf32>
    %c0_8 = arith.constant 0 : index
    %c0_9 = arith.constant 0 : index
    %c0_10 = arith.constant 0 : index
    %c0_11 = arith.constant 0 : index
    %16 = vector.load %arg5[%c0_8, %c0_9, %c0_10, %c0_11] : memref<1x8x8x8xf32, #tpu.memory_space<vmem>>, vector<1x8x8x8xf32>
    %17 = vector.shape_cast %16 : vector<1x8x8x8xf32> to vector<8x8x8xf32>
    %18 = vector.shape_cast %15 : vector<8x8x8xf32> to vector<1x8x8x8xf32>
    tpu.vector_store %arg5[%c0_8, %c0_9, %c0_10, %c0_11], %18 {strides = array<i32>} : memref<1x8x8x8xf32, #tpu.memory_space<vmem>>, vector<1x8x8x8xf32>,
    return
  }
  func.func @transform_0(%arg0: i32, %arg1: i32) -> (i32, i32, i32, i32) {
    %c0_i32 = arith.constant 0 : i32
    %c0_i32_0 = arith.constant 0 : i32
    %c0_i32_1 = arith.constant 0 : i32
    return %arg0, %arg1, %c0_i32, %c0_i32_0 : i32, i32, i32, i32
  }
  func.func @transform_1(%arg0: i32, %arg1: i32) -> (i32, i32) {
    %c0_i32 = arith.constant 0 : i32
    %c0_i32_0 = arith.constant 0 : i32
    %c0_i32_1 = arith.constant 0 : i32
    return %c0_i32, %c0_i32_0 : i32, i32
  }
  func.func @transform_2(%arg0: i32, %arg1: i32) -> (i32, i32) {
    %c0_i32 = arith.constant 0 : i32
    %c0_i32_0 = arith.constant 0 : i32
    %c0_i32_1 = arith.constant 0 : i32
    return %c0_i32, %c0_i32_0 : i32, i32
  }
  func.func @transform_3(%arg0: i32, %arg1: i32) -> (i32, i32, i32, i32) {
    %c0_i32 = arith.constant 0 : i32
    %c0_i32_0 = arith.constant 0 : i32
    %c0_i32_1 = arith.constant 0 : i32
    return %arg0, %arg1, %c0_i32, %c0_i32_0 : i32, i32, i32, i32
  }
}

</mosaic_0001>

<llo_original>
// kernel: down_forward.3
$region0: #{down_forward.3}
  #allocation0 [shape = 'u32[]', space=smem, size = 0x4, offset = 0x4, fixed_abs, tag = 'smem constant byte address 0x4 - core index']
  #allocation1 [shape = 'u32[144,128]{1,0:T(1,128)}', space=vmem, size = 0x12000, scoped, tag = 'internal scratch']
  %s0 = inlined_call_operand.vmem [shape: bf16[2,8,8,8], index: 0, kind: input, shape index: {}]
  %s1 = inlined_call_operand.vmem [shape: f32[1,8], index: 1, kind: input, shape index: {}]
  %s2 = inlined_call_operand.vmem [shape: f32[1,8], index: 2, kind: input, shape index: {}]
  %s3 = inlined_call_operand.vmem [shape: f32[2,8,8,8], index: 3, kind: output, shape index: {}]
  %s4 = sld [smem:[#allocation0]]
  $region45: #{down_forward.3} parent=0
    _
  %s6 = ssub.s32 1, %s4
  %s7 = scalar_select 0, %s6, %s4
  loop: start=0, step=1, limit=4
  $region2: #{down_forward.3} parent=0 // loop_pre_header
    _
  $region3: #{down_forward.3} parent=0 // loop_header
    %s9 = sphi 0, %s13
    %p10 = scmp.ge.s32.totalorder %s9, 4
    %s16 = sphi 0, %s28
    %s17 = sphi 0, %s24
    %s18 = sphi 0, %s16
    %s19 = sphi 0, %s17
    %s20 = sphi 0, %s18
    %s21 = sphi 0, %s19
    %s33 = sphi 0, %s35
    %s36 = sphi 0, %s33
    %s37 = sphi 0, %s36
    %s53 = sphi 0, %s37
    %s57 = sphi 0, %s57
    %s59 = sphi 0, %s57
    %s60 = sphi 0, %s59
    %s74 = sphi 0, %s60
    %s78 = sphi 0, %s78
    %s80 = sphi 0, %s78
    %s81 = sphi 0, %s80
    %s95 = sphi 0, %s81
    %s103 = sphi 0, %s105
    %s106 = sphi 0, %s103
    %s107 = sphi 0, %s106
    %s123 = sphi 0, %s107
  $region4: #{down_forward.3} parent=0 // loop_header_branch
    %12 = sbr.rel (%p10) target = $region8
  $region5: #{down_forward.3} parent=0 // loop_body
    %s14 = ssub.s32 %s9, 1
    %s15 = ssub.s32 %s9, 2
    %s22 = sadd.s32 1, %s17
    %p23 = scmp.ge.s32.totalorder %s22, 1
    %s24 = scalar_select %p23, 0, %s22
    %s25 = sadd.s32 1, %s16
    %s26 = scalar_select %p23, %s25, %s16
    %p27 = scmp.ge.s32.totalorder %s26, 2
    %s28 = scalar_select %p27, 0, %s26
    %s29 = ssub.s32 %s16, %s28
    %s30 = ssub.s32 %s17, %s24
    %s31 = sor.u32 %s29, %s30
    %p32 = scmp.eq.s32.totalorder %s31, 0
    %s34 = sadd.s32 %s33, 1
    %s35 = scalar_select %p32, %s33, %s34
    %p38 = pneg %p32
    %p39 = scmp.eq.s32.totalorder %s9, 1
    %p40 = por %p38, %p39
    %p41 = scmp.ne.s32.totalorder %s33, %s36
    %p42 = scmp.eq.s32.totalorder %s9, 0
    %p43 = por %p41, %p42
    %p44 = scmp.ne.s32.totalorder %s33, %s36
    %p45 = scmp.eq.s32.totalorder %s14, 1
    %p46 = por %p44, %p45
    %p47 = scmp.ne.s32.totalorder %s36, %s37
    %p48 = scmp.eq.s32.totalorder %s14, 0
    %p49 = por %p47, %p48
    %p50 = scmp.ne.s32.totalorder %s36, %s37
    %p51 = scmp.eq.s32.totalorder %s15, 1
    %p52 = por %p50, %p51
    %p54 = scmp.ne.s32.totalorder %s37, %s53
    %p55 = scmp.eq.s32.totalorder %s15, 0
    %p56 = por %p54, %p55
    %s58 = sadd.s32 %s57, 1
    %p61 = scmp.eq.s32.totalorder %s9, 1
    %p62 = scmp.ne.s32.totalorder %s57, %s59
    %p63 = scmp.eq.s32.totalorder %s9, 0
    %p64 = por %p62, %p63
    %p65 = scmp.ne.s32.totalorder %s57, %s59
    %p66 = scmp.eq.s32.totalorder %s14, 1
    %p67 = por %p65, %p66
    %p68 = scmp.ne.s32.totalorder %s59, %s60
    %p69 = scmp.eq.s32.totalorder %s14, 0
    %p70 = por %p68, %p69
    %p71 = scmp.ne.s32.totalorder %s59, %s60
    %p72 = scmp.eq.s32.totalorder %s15, 1
    %p73 = por %p71, %p72
    %p75 = scmp.ne.s32.totalorder %s60, %s74
    %p76 = scmp.eq.s32.totalorder %s15, 0
    %p77 = por %p75, %p76
    %s79 = sadd.s32 %s78, 1
    %p82 = scmp.eq.s32.totalorder %s9, 1
    %p83 = scmp.ne.s32.totalorder %s78, %s80
    %p84 = scmp.eq.s32.totalorder %s9, 0
    %p85 = por %p83, %p84
    %p86 = scmp.ne.s32.totalorder %s78, %s80
    %p87 = scmp.eq.s32.totalorder %s14, 1
    %p88 = por %p86, %p87
    %p89 = scmp.ne.s32.totalorder %s80, %s81
    %p90 = scmp.eq.s32.totalorder %s14, 0
    %p91 = por %p89, %p90
    %p92 = scmp.ne.s32.totalorder %s80, %s81
    %p93 = scmp.eq.s32.totalorder %s15, 1
    %p94 = por %p92, %p93
    %p96 = scmp.ne.s32.totalorder %s81, %s95
    %p97 = scmp.eq.s32.totalorder %s15, 0
    %p98 = por %p96, %p97
    %s99 = ssub.s32 %s16, %s28
    %s100 = ssub.s32 %s17, %s24
    %s101 = sor.u32 %s99, %s100
    %p102 = scmp.eq.s32.totalorder %s101, 0
    %s104 = sadd.s32 %s103, 1
    %s105 = scalar_select %p102, %s103, %s104
    %p108 = pneg %p102
    %p109 = scmp.eq.s32.totalorder %s9, 1
    %p110 = por %p108, %p109
    %p111 = scmp.ne.s32.totalorder %s103, %s106
    %p112 = scmp.eq.s32.totalorder %s9, 0
    %p113 = por %p111, %p112
    %p114 = scmp.ne.s32.totalorder %s103, %s106
    %p115 = scmp.eq.s32.totalorder %s14, 1
    %p116 = por %p114, %p115
    %p117 = scmp.ne.s32.totalorder %s106, %s107
    %p118 = scmp.eq.s32.totalorder %s14, 0
    %p119 = por %p117, %p118
    %p120 = scmp.ne.s32.totalorder %s106, %s107
    %p121 = scmp.eq.s32.totalorder %s15, 1
    %p122 = por %p120, %p121
    %p124 = scmp.ne.s32.totalorder %s107, %s123
    %p125 = scmp.eq.s32.totalorder %s15, 0
    %p126 = por %p124, %p125
    %p127 = scmp.le.s32.totalorder 1, %s9
    %p128 = scmp.lt.s32.totalorder %s9, 3
    %p129 = pnand %p127, %p128
    %p130 = pneg %p129
    // Predicated region
    $region9: #{down_forward.3} parent=5 // pred_check
      _
    $region10: #{down_forward.3} parent=5 // pred_check_branch
      %132 = sbr.rel (%p129) target = $region12
    $region11: #{down_forward.3} parent=5 // pred_region
      %s133 = ssub.s32 %s9, 1
      // Predicated region
      $region13: #{down_forward.3} parent=11 // pred_check
        %p134 = pneg %p70
      $region14: #{down_forward.3} parent=11 // pred_check_branch
        %136 = sbr.rel (%p134) target = $region16
      $region15: #{down_forward.3} parent=11 // pred_region
        _
      $region16: #{down_forward.3} parent=11 // pred_fallthru
        _
      // Predicated region
      $region17: #{down_forward.3} parent=11 // pred_check
        %p137 = pneg %p91
      $region18: #{down_forward.3} parent=11 // pred_check_branch
        %139 = sbr.rel (%p137) target = $region20
      $region19: #{down_forward.3} parent=11 // pred_region
        _
      $region20: #{down_forward.3} parent=11 // pred_fallthru
        _
    $region12: #{down_forward.3} parent=5 // pred_fallthru
      _
    %p140 = scmp.lt.s32.totalorder %s9, 2
    // Predicated region
    $region21: #{down_forward.3} parent=5 // pred_check
      %p141 = pneg %p140
    $region22: #{down_forward.3} parent=5 // pred_check_branch
      %143 = sbr.rel (%p141) target = $region24
    $region23: #{down_forward.3} parent=5 // pred_region
      // Predicated region
      $region25: #{down_forward.3} parent=23 // pred_check
        %p144 = pneg %p43
      $region26: #{down_forward.3} parent=23 // pred_check_branch
        %146 = sbr.rel (%p144) target = $region28
      $region27: #{down_forward.3} parent=23 // pred_region
        %s147 = smul.u32 8, %s17
        %p148 = scmp.lt.s32.totalorder %s16, 1
        %s149 = scalar_select %p148, %s16, 1
        %p150 = scmp.lt.s32.totalorder %s147, 7
        %s151 = scalar_select %p150, %s147, 7
        %s152 = smul.addr %s149, 8
        %s153 = sadd.s32 %s151, %s152
        %s154 = smul.addr %s153, 4
        %s155 = scalar_lea.vmem %s0, %s154
        %s156 = smul.u32 8, %s17
      $region28: #{down_forward.3} parent=23 // pred_fallthru
        _
    $region24: #{down_forward.3} parent=5 // pred_fallthru
      _
    %p157 = scmp.le.s32.totalorder 1, %s9
    %p158 = scmp.lt.s32.totalorder %s9, 3
    %p159 = pnand %p157, %p158
    %p160 = pneg %p159
    // Predicated region
    $region29: #{down_forward.3} parent=5 // pred_check
      _
    $region30: #{down_forward.3} parent=5 // pred_check_branch
      %162 = sbr.rel (%p159) target = $region32
    $region31: #{down_forward.3} parent=5 // pred_region
      %s163 = ssub.s32 %s9, 1
      %s164 = smul.u32 8, %s19
      %p165 = scmp.lt.s32.totalorder %s18, 1
      %s166 = scalar_select %p165, %s18, 1
      %p167 = scmp.lt.s32.totalorder %s164, 7
      %s168 = scalar_select %p167, %s164, 7
      %s169 = smul.addr %s166, 8
      %s170 = sadd.s32 %s168, %s169
      %s171 = smul.addr %s170, 4
      %s172 = scalar_lea.vmem %s0, %s171
      %p173 = pneg %p49
      %p174 = pneg %p46
      %p175 = pneg %p70
      %p176 = pneg %p67
      %p177 = pneg %p91
      %p178 = pneg %p88
      %p179 = pneg %p119
      %p180 = pneg %p116
      %s181 = smul.u32 8, %s19
      %p182 = scmp.lt.s32.totalorder %s18, 1
      %s183 = scalar_select %p182, %s18, 1
      %p184 = scmp.lt.s32.totalorder %s181, 7
      %s185 = scalar_select %p184, %s181, 7
      %s186 = smul.addr %s183, 8
      %s187 = sadd.s32 %s185, %s186
      %s188 = smul.addr %s187, 8
      %s189 = scalar_lea.vmem %s3, %s188
      %s190 = smul.u32 8, %s19
      %p191 = scmp.lt.s32.totalorder %s18, 1
      %s192 = scalar_select %p191, %s18, 1
      %p193 = scmp.lt.s32.totalorder %s190, 7
      %s194 = scalar_select %p193, %s190, 7
      %s195 = smul.addr %s192, 8
      %s196 = sadd.s32 %s194, %s195
      %s197 = smul.addr %s196, 4
      %s198 = scalar_lea.vmem %s0, %s197
      %s199 = smul.u32 8, %s19
      %s200 = smul.u32 8, %s19
      %p201 = scmp.lt.s32.totalorder %s18, 1
      %s202 = scalar_select %p201, %s18, 1
      %p203 = scmp.lt.s32.totalorder %s200, 7
      %s204 = scalar_select %p203, %s200, 7
      %s205 = smul.addr %s202, 8
      %s206 = sadd.s32 %s204, %s205
      %s207 = smul.addr %s206, 8
      %s208 = scalar_lea.vmem %s3, %s207
      %s209 = smul.u32 8, %s19
      %v210 = vld [vmem:[%s198] sm:$0xf]
      %v211 = vld [vmem:[%s198 + $0x4] sm:$0xf]
      %v212 = vld [vmem:[%s198 + $0x8] sm:$0xf]
      %v213 = vld [vmem:[%s198 + $0xc] sm:$0xf]
      %v214 = vld [vmem:[%s198 + $0x10] sm:$0xf]
      %v215 = vld [vmem:[%s198 + $0x14] sm:$0xf]
      %v216 = vld [vmem:[%s198 + $0x18] sm:$0xf]
      %v217 = vld [vmem:[%s198 + $0x1c] sm:$0xf]
      %v218 = vunpack.c.l.bf16 %v210
      %v219 = vunpack.c.l.bf16 %v211
      %v220 = vunpack.c.l.bf16 %v212
      %v221 = vunpack.c.l.bf16 %v213
      %v222 = vunpack.c.l.bf16 %v214
      %v223 = vunpack.c.l.bf16 %v215
      %v224 = vunpack.c.l.bf16 %v216
      %v225 = vunpack.c.l.bf16 %v217
      %v226 = vld [vmem:[%s1] sm:$0x1]
      %v228 = vlaneseq
      %v229 = vshrl.u32 %v228, 7
      %v230 = vsub.s32 0, %v229
      %v231 = vrot.slane %v226, %v230
      %v233 = vmul.f32 %v218, %v231
      %v234 = vmul.f32 %v219, %v231
      %v235 = vmul.f32 %v220, %v231
      %v236 = vmul.f32 %v221, %v231
      %v237 = vmul.f32 %v222, %v231
      %v238 = vmul.f32 %v223, %v231
      %v239 = vmul.f32 %v224, %v231
      %v240 = vmul.f32 %v225, %v231
      %v241 = vld [vmem:[%s2] sm:$0x1]
      %v243 = vlaneseq
      %v244 = vshrl.u32 %v243, 7
      %v245 = vsub.s32 0, %v244
      %v246 = vrot.slane %v241, %v245
      %v248 = vadd.f32 %v233, %v246
      %v249 = vadd.f32 %v234, %v246
      %v250 = vadd.f32 %v235, %v246
      %v251 = vadd.f32 %v236, %v246
      %v252 = vadd.f32 %v237, %v246
      %v253 = vadd.f32 %v238, %v246
      %v254 = vadd.f32 %v239, %v246
      %v255 = vadd.f32 %v240, %v246
      %vm256 = vcmp.gt.f32.partialorder %v248, 0.0
      %vm257 = vcmp.gt.f32.partialorder %v249, 0.0
      %vm258 = vcmp.gt.f32.partialorder %v250, 0.0
      %vm259 = vcmp.gt.f32.partialorder %v251, 0.0
      %vm260 = vcmp.gt.f32.partialorder %v252, 0.0
      %vm261 = vcmp.gt.f32.partialorder %v253, 0.0
      %vm262 = vcmp.gt.f32.partialorder %v254, 0.0
      %vm263 = vcmp.gt.f32.partialorder %v255, 0.0
      %v264 = vmul.f32 %v248, 0.2
      %v265 = vmul.f32 %v249, 0.2
      %v266 = vmul.f32 %v250, 0.2
      %v267 = vmul.f32 %v251, 0.2
      %v268 = vmul.f32 %v252, 0.2
      %v269 = vmul.f32 %v253, 0.2
      %v270 = vmul.f32 %v254, 0.2
      %v271 = vmul.f32 %v255, 0.2
      %v272 = vsel %vm256, %v248, %v264
      %v273 = vsel %vm257, %v249, %v265
      %v274 = vsel %vm258, %v250, %v266
      %v275 = vsel %vm259, %v251, %v267
      %v276 = vsel %vm260, %v252, %v268
      %v277 = vsel %vm261, %v253, %v269
      %v278 = vsel %vm262, %v254, %v270
      %v279 = vsel %vm263, %v255, %v271
      %vm280 = vcmask 64512
      %281 = vst.msk [vmem:[%s208] sm:$0xff] %vm280, %v272
      %282 = vst.msk [vmem:[%s208 + $0x8] sm:$0xff] %vm280, %v273
      %283 = vst.msk [vmem:[%s208 + $0x10] sm:$0xff] %vm280, %v274
      %284 = vst.msk [vmem:[%s208 + $0x18] sm:$0xff] %vm280, %v275
      %285 = vst.msk [vmem:[%s208 + $0x20] sm:$0xff] %vm280, %v276
      %286 = vst.msk [vmem:[%s208 + $0x28] sm:$0xff] %vm280, %v277
      %287 = vst.msk [vmem:[%s208 + $0x30] sm:$0xff] %vm280, %v278
      %288 = vst.msk [vmem:[%s208 + $0x38] sm:$0xff] %vm280, %v279
      %s289 = smul.u32 8, %s19
      %p290 = scmp.lt.s32.totalorder %s18, 1
      %s291 = scalar_select %p290, %s18, 1
      %p292 = scmp.lt.s32.totalorder %s289, 7
      %s293 = scalar_select %p292, %s289, 7
      %s294 = smul.addr %s291, 8
      %s295 = sadd.s32 %s293, %s294
      %s296 = smul.addr %s295, 8
      %s297 = scalar_lea.vmem %s3, %s296
      // Predicated region
      $region33: #{down_forward.3} parent=31 // pred_check
        %p298 = pneg %p116
      $region34: #{down_forward.3} parent=31 // pred_check_branch
        %300 = sbr.rel (%p298) target = $region36
      $region35: #{down_forward.3} parent=31 // pred_region
        %s301 = smul.u32 8, %s19
      $region36: #{down_forward.3} parent=31 // pred_fallthru
        _
    $region32: #{down_forward.3} parent=5 // pred_fallthru
      _
    %p302 = scmp.le.s32.totalorder 2, %s9
    // Predicated region
    $region37: #{down_forward.3} parent=5 // pred_check
      %p303 = pneg %p302
    $region38: #{down_forward.3} parent=5 // pred_check_branch
      %305 = sbr.rel (%p303) target = $region40
    $region39: #{down_forward.3} parent=5 // pred_region
      %s306 = ssub.s32 %s9, 2
      // Predicated region
      $region41: #{down_forward.3} parent=39 // pred_check
        %p307 = pneg %p122
      $region42: #{down_forward.3} parent=39 // pred_check_branch
        %309 = sbr.rel (%p307) target = $region44
      $region43: #{down_forward.3} parent=39 // pred_region
        %s310 = smul.u32 8, %s21
        %p311 = scmp.lt.s32.totalorder %s20, 1
        %s312 = scalar_select %p311, %s20, 1
        %p313 = scmp.lt.s32.totalorder %s310, 7
        %s314 = scalar_select %p313, %s310, 7
        %s315 = smul.addr %s312, 8
        %s316 = sadd.s32 %s314, %s315
        %s317 = smul.addr %s316, 8
        %s318 = scalar_lea.vmem %s3, %s317
      $region44: #{down_forward.3} parent=39 // pred_fallthru
        _
    $region40: #{down_forward.3} parent=5 // pred_fallthru
      _
  $region6: #{down_forward.3} parent=0 // loop_footer
    %s13 = sadd.s32 1, %s9
  $region7: #{down_forward.3} parent=0 // loop_footer_branch
    %8 = sbr.rel target = $region3
  $region8: #{down_forward.3} parent=0 // loop_exit
    _

// kernel: down_forward.2
$region0: #{down_forward.2}
  #allocation0 [shape = 'u32[]', space=smem, size = 0x4, offset = 0x4, fixed_abs, tag = 'smem constant byte address 0x4 - core index']
  #allocation1 [shape = 'u32[144,128]{1,0:T(1,128)}', space=vmem, size = 0x12000, scoped, tag = 'internal scratch']
  %s0 = inlined_call_operand.vmem [shape: bf16[2,2,2,9,9,4], index: 0, kind: input, shape index: {}, may-alias: {0,1}]
  %s1 = inlined_call_operand.vmem [shape: bf16[2,2,2,9,9,4], index: 1, kind: input, shape index: {}, may-alias: {0,1}]
  %s2 = inlined_call_operand.vmem [shape: bf16[36,8], index: 2, kind: input, shape index: {}]
  %s3 = inlined_call_operand.vmem [shape: bf16[2,8,8,8], index: 3, kind: output, shape index: {0}]
  %s4 = inlined_call_operand.vmem [shape: f32[2,1,1,8], index: 4, kind: output, shape index: {1}]
  %s5 = inlined_call_operand.vmem [shape: f32[2,1,1,8], index: 5, kind: output, shape index: {2}]
  %6 = xla_tuple %s3, %s4, %s5
  %s7 = sld [smem:[#allocation0]]
  $region164: #{down_forward.2} parent=0
    _
  %s9 = ssub.s32 1, %s7
  %s10 = scalar_select 0, %s9, %s7
  $region1: #{down_forward.2} parent=0
    #allocation2 [shape = 'u8[262144]{0}', space=vmem, size = 0x40000, scoped, tag = 'input window, operand 0']
    #allocation3 [shape = 'u8[16384]{0}', space=vmem, size = 0x4000, scoped, tag = 'input window, operand 1']
    loop: start=0, step=1, limit=4
    $region2: #{down_forward.2} parent=1 // loop_pre_header
      _
    $region3: #{down_forward.2} parent=1 // loop_header
      %s12 = sphi 0, %s16
      %p13 = scmp.ge.s32.totalorder %s12, 4
      %s19 = sphi 0, %s31
      %s20 = sphi 0, %s27
      %s21 = sphi 0, %s19
      %s22 = sphi 0, %s20
      %s23 = sphi 0, %s21
      %s24 = sphi 0, %s22
      %s36 = sphi 0, %s38
      %s39 = sphi 0, %s36
      %s40 = sphi 0, %s39
      %s56 = sphi 0, %s40
      %s68 = sphi 0, %s70
      %s71 = sphi 0, %s68
      %s72 = sphi 0, %s71
      %s88 = sphi 0, %s72
      %s92 = sphi 0, %s92
      %s94 = sphi 0, %s92
      %s95 = sphi 0, %s94
      %s109 = sphi 0, %s95
      %s117 = sphi 0, %s119
      %s120 = sphi 0, %s117
      %s121 = sphi 0, %s120
      %s137 = sphi 0, %s121
      %s145 = sphi 0, %s147
      %s148 = sphi 0, %s145
      %s149 = sphi 0, %s148
      %s165 = sphi 0, %s149
      %s173 = sphi 0, %s175
      %s176 = sphi 0, %s173
      %s177 = sphi 0, %s176
      %s193 = sphi 0, %s177
    $region4: #{down_forward.2} parent=1 // loop_header_branch
      %15 = sbr.rel (%p13) target = $region8
    $region5: #{down_forward.2} parent=1 // loop_body
      %s17 = ssub.s32 %s12, 1
      %s18 = ssub.s32 %s12, 2
      %s25 = sadd.s32 1, %s20
      %p26 = scmp.ge.s32.totalorder %s25, 1
      %s27 = scalar_select %p26, 0, %s25
      %s28 = sadd.s32 1, %s19
      %s29 = scalar_select %p26, %s28, %s19
      %p30 = scmp.ge.s32.totalorder %s29, 2
      %s31 = scalar_select %p30, 0, %s29
      %s32 = ssub.s32 %s19, %s31
      %s33 = ssub.s32 %s20, %s27
      %s34 = sor.u32 %s32, %s33
      %p35 = scmp.eq.s32.totalorder %s34, 0
      %s37 = sadd.s32 %s36, 1
      %s38 = scalar_select %p35, %s36, %s37
      %p41 = pneg %p35
      %p42 = scmp.eq.s32.totalorder %s12, 1
      %p43 = por %p41, %p42
      %p44 = scmp.ne.s32.totalorder %s36, %s39
      %p45 = scmp.eq.s32.totalorder %s12, 0
      %p46 = por %p44, %p45
      %p47 = scmp.ne.s32.totalorder %s36, %s39
      %p48 = scmp.eq.s32.totalorder %s17, 1
      %p49 = por %p47, %p48
      %p50 = scmp.ne.s32.totalorder %s39, %s40
      %p51 = scmp.eq.s32.totalorder %s17, 0
      %p52 = por %p50, %p51
      %p53 = scmp.ne.s32.totalorder %s39, %s40
      %p54 = scmp.eq.s32.totalorder %s18, 1
      %p55 = por %p53, %p54
      %p57 = scmp.ne.s32.totalorder %s40, %s56
      %p58 = scmp.eq.s32.totalorder %s18, 0
      %p59 = por %p57, %p58
      %s60 = sadd.s32 %s20, 1
      %s61 = smul.u32 %s60, 8
      %s62 = sadd.s32 %s27, 1
      %s63 = smul.u32 %s62, 8
      %s64 = ssub.s32 %s19, %s31
      %s65 = ssub.s32 %s61, %s63
      %s66 = sor.u32 %s64, %s65
      %p67 = scmp.eq.s32.totalorder %s66, 0
      %s69 = sadd.s32 %s68, 1
      %s70 = scalar_select %p67, %s68, %s69
      %p73 = pneg %p67
      %p74 = scmp.eq.s32.totalorder %s12, 1
      %p75 = por %p73, %p74
      %p76 = scmp.ne.s32.totalorder %s68, %s71
      %p77 = scmp.eq.s32.totalorder %s12, 0
      %p78 = por %p76, %p77
      %p79 = scmp.ne.s32.totalorder %s68, %s71
      %p80 = scmp.eq.s32.totalorder %s17, 1
      %p81 = por %p79, %p80
      %p82 = scmp.ne.s32.totalorder %s71, %s72
      %p83 = scmp.eq.s32.totalorder %s17, 0
      %p84 = por %p82, %p83
      %p85 = scmp.ne.s32.totalorder %s71, %s72
      %p86 = scmp.eq.s32.totalorder %s18, 1
      %p87 = por %p85, %p86
      %p89 = scmp.ne.s32.totalorder %s72, %s88
      %p90 = scmp.eq.s32.totalorder %s18, 0
      %p91 = por %p89, %p90
      %s93 = sadd.s32 %s92, 1
      %p96 = scmp.eq.s32.totalorder %s12, 1
      %p97 = scmp.ne.s32.totalorder %s92, %s94
      %p98 = scmp.eq.s32.totalorder %s12, 0
      %p99 = por %p97, %p98
      %p100 = scmp.ne.s32.totalorder %s92, %s94
      %p101 = scmp.eq.s32.totalorder %s17, 1
      %p102 = por %p100, %p101
      %p103 = scmp.ne.s32.totalorder %s94, %s95
      %p104 = scmp.eq.s32.totalorder %s17, 0
      %p105 = por %p103, %p104
      %p106 = scmp.ne.s32.totalorder %s94, %s95
      %p107 = scmp.eq.s32.totalorder %s18, 1
      %p108 = por %p106, %p107
      %p110 = scmp.ne.s32.totalorder %s95, %s109
      %p111 = scmp.eq.s32.totalorder %s18, 0
      %p112 = por %p110, %p111
      %s113 = ssub.s32 %s19, %s31
      %s114 = ssub.s32 %s20, %s27
      %s115 = sor.u32 %s113, %s114
      %p116 = scmp.eq.s32.totalorder %s115, 0
      %s118 = sadd.s32 %s117, 1
      %s119 = scalar_select %p116, %s117, %s118
      %p122 = pneg %p116
      %p123 = scmp.eq.s32.totalorder %s12, 1
      %p124 = por %p122, %p123
      %p125 = scmp.ne.s32.totalorder %s117, %s120
      %p126 = scmp.eq.s32.totalorder %s12, 0
      %p127 = por %p125, %p126
      %p128 = scmp.ne.s32.totalorder %s117, %s120
      %p129 = scmp.eq.s32.totalorder %s17, 1
      %p130 = por %p128, %p129
      %p131 = scmp.ne.s32.totalorder %s120, %s121
      %p132 = scmp.eq.s32.totalorder %s17, 0
      %p133 = por %p131, %p132
      %p134 = scmp.ne.s32.totalorder %s120, %s121
      %p135 = scmp.eq.s32.totalorder %s18, 1
      %p136 = por %p134, %p135
      %p138 = scmp.ne.s32.totalorder %s121, %s137
      %p139 = scmp.eq.s32.totalorder %s18, 0
      %p140 = por %p138, %p139
      %s141 = ssub.s32 %s19, %s31
      %s142 = ssub.s32 %s20, %s27
      %s143 = sor.u32 %s141, %s142
      %p144 = scmp.eq.s32.totalorder %s143, 0
      %s146 = sadd.s32 %s145, 1
      %s147 = scalar_select %p144, %s145, %s146
      %p150 = pneg %p144
      %p151 = scmp.eq.s32.totalorder %s12, 1
      %p152 = por %p150, %p151
      %p153 = scmp.ne.s32.totalorder %s145, %s148
      %p154 = scmp.eq.s32.totalorder %s12, 0
      %p155 = por %p153, %p154
      %p156 = scmp.ne.s32.totalorder %s145, %s148
      %p157 = scmp.eq.s32.totalorder %s17, 1
      %p158 = por %p156, %p157
      %p159 = scmp.ne.s32.totalorder %s148, %s149
      %p160 = scmp.eq.s32.totalorder %s17, 0
      %p161 = por %p159, %p160
      %p162 = scmp.ne.s32.totalorder %s148, %s149
      %p163 = scmp.eq.s32.totalorder %s18, 1
      %p164 = por %p162, %p163
      %p166 = scmp.ne.s32.totalorder %s149, %s165
      %p167 = scmp.eq.s32.totalorder %s18, 0
      %p168 = por %p166, %p167
      %s169 = ssub.s32 %s19, %s31
      %s170 = ssub.s32 %s20, %s27
      %s171 = sor.u32 %s169, %s170
      %p172 = scmp.eq.s32.totalorder %s171, 0
      %s174 = sadd.s32 %s173, 1
      %s175 = scalar_select %p172, %s173, %s174
      %p178 = pneg %p172
      %p179 = scmp.eq.s32.totalorder %s12, 1
      %p180 = por %p178, %p179
      %p181 = scmp.ne.s32.totalorder %s173, %s176
      %p182 = scmp.eq.s32.totalorder %s12, 0
      %p183 = por %p181, %p182
      %p184 = scmp.ne.s32.totalorder %s173, %s176
      %p185 = scmp.eq.s32.totalorder %s17, 1
      %p186 = por %p184, %p185
      %p187 = scmp.ne.s32.totalorder %s176, %s177
      %p188 = scmp.eq.s32.totalorder %s17, 0
      %p189 = por %p187, %p188
      %p190 = scmp.ne.s32.totalorder %s176, %s177
      %p191 = scmp.eq.s32.totalorder %s18, 1
      %p192 = por %p190, %p191
      %p194 = scmp.ne.s32.totalorder %s177, %s193
      %p195 = scmp.eq.s32.totalorder %s18, 0
      %p196 = por %p194, %p195
      %p197 = scmp.le.s32.totalorder 1, %s12
      %p198 = scmp.lt.s32.totalorder %s12, 3
      %p199 = pnand %p197, %p198
      %p200 = pneg %p199
      // Predicated region
      $region9: #{down_forward.2} parent=5 // pred_check
        _
      $region10: #{down_forward.2} parent=5 // pred_check_branch
        %202 = sbr.rel (%p199) target = $region12
      $region11: #{down_forward.2} parent=5 // pred_region
        %s203 = ssub.s32 %s12, 1
        // Predicated region
        $region13: #{down_forward.2} parent=11 // pred_check
          %p204 = pneg %p105
        $region14: #{down_forward.2} parent=11 // pred_check_branch
          %206 = sbr.rel (%p204) target = $region16
        $region15: #{down_forward.2} parent=11 // pred_region
          _
        $region16: #{down_forward.2} parent=11 // pred_fallthru
          _
      $region12: #{down_forward.2} parent=5 // pred_fallthru
        _
      %p207 = scmp.lt.s32.totalorder %s12, 2
      // Predicated region
      $region17: #{down_forward.2} parent=5 // pred_check
        %p208 = pneg %p207
      $region18: #{down_forward.2} parent=5 // pred_check_branch
        %210 = sbr.rel (%p208) target = $region20
      $region19: #{down_forward.2} parent=5 // pred_region
        // Predicated region
        $region21: #{down_forward.2} parent=19 // pred_check
          %p211 = pneg %p46
        $region22: #{down_forward.2} parent=19 // pred_check_branch
          %213 = sbr.rel (%p211) target = $region24
        $region23: #{down_forward.2} parent=19 // pred_region
          %s214 = sand.u32 %s36, 1
          %s215 = sand.u32 %s36, 1
          %s216 = smul.addr %s215, 256
          %s217 = scalar_lea.vmem [#allocation2], %s216
          %s218 = smul.u32 8, %s20
          %s219 = ssub.s32 9, %s218
          %p220 = scmp.lt.s32.totalorder %s219, 8
          %s221 = scalar_select %p220, %s219, 8
          %s222 = smul.u32 256, %s221
          %s223 = smul.u32 %s222, 2
          %p224 = scmp.ne.s32.totalorder 0, %s223
          %s225 = smul.addr %s218, 2
          %s226 = smul.addr %s19, 72
          %s227 = sadd.s32 %s225, %s226
          %s228 = smul.addr %s227, 4
          %s229 = scalar_lea.vmem %s0, %s228
          %s230 = smul.u32 %s221, 2
          // Predicated region
          $region25: #{down_forward.2} parent=23 // pred_check
            %p231 = pneg %p224
          $region26: #{down_forward.2} parent=23 // pred_check_branch
            %233 = sbr.rel (%p231) target = $region28
          $region27: #{down_forward.2} parent=23 // pred_region
            // Predicated region
            $region29: #{down_forward.2} parent=27 // pred_check
              _
            $region30: #{down_forward.2} parent=27 // pred_check_branch
              %235 = sbr.rel target = $region32
            $region31: #{down_forward.2} parent=27 // pred_region
              // Predicated region
              $region51: #{down_forward.2} parent=31 // pred_check
                _
              $region52: #{down_forward.2} parent=31 // pred_check_branch
                %417 = sbr.rel (0) target = $region54
              $region53: #{down_forward.2} parent=31 // pred_region
                %s418 = sshrl.u32 %s230, 4
                // While loop
                $region55: #{down_forward.2} parent=53 // loop_pre_header
                  _
                $region56: #{down_forward.2} parent=53 // loop_header
                  %s420 = sphi 0, %s422
                  %p421 = scmp.ge.s32.totalorder %s420, %s418
                  %s425 = sphi 0, %s430
                  %s426 = sphi %s229, %s433
                  %s427 = sphi %s217, %s434
                $region57: #{down_forward.2} parent=53 // loop_header_branch
                  %424 = sbr.rel (%p421) target = $region61
                $region58: #{down_forward.2} parent=53 // loop_body
                  %s428 = sadd.s32 1, %s425
                  %p429 = scmp.ge.s32.totalorder %s428, %s418
                  %s430 = scalar_select %p429, 0, %s428
                  %s431 = smul.u32 %s430, 64
                  %s432 = smul.u32 %s430, 64
                  %s433 = scalar_lea.vmem %s229, %s431
                  %s434 = scalar_lea.vmem %s217, %s432 [#allocation2]
                $region59: #{down_forward.2} parent=53 // loop_footer
                  %s422 = sadd.s32 %s420, 1
                $region60: #{down_forward.2} parent=53 // loop_footer_branch
                  %419 = sbr.rel target = $region56
                $region61: #{down_forward.2} parent=53 // loop_exit
                  _
                %s435 = sshrl.u32 %s230, 4
                %s436 = sand.u32 %s230, 15
                %s437 = smul.u32 %s435, 16
                %s438 = smul.u32 4, %s437
                %s439 = scalar_lea.vmem %s229, %s438
                %s440 = smul.u32 4, %s437
                %s441 = scalar_lea.vmem %s217, %s440 [#allocation2]
                // While loop
                $region62: #{down_forward.2} parent=53 // loop_pre_header
                  _
                $region63: #{down_forward.2} parent=53 // loop_header
                  %s443 = sphi 0, %s445
                  %p444 = scmp.ge.s32.totalorder %s443, %s436
                  %s448 = sphi 0, %s453
                  %s449 = sphi %s439, %s456
                  %s450 = sphi %s441, %s457
                $region64: #{down_forward.2} parent=53 // loop_header_branch
                  %447 = sbr.rel (%p444) target = $region68
                $region65: #{down_forward.2} parent=53 // loop_body
                  %s451 = sadd.s32 1, %s448
                  %p452 = scmp.ge.s32.totalorder %s451, %s436
                  %s453 = scalar_select %p452, 0, %s451
                  %s454 = smul.u32 %s453, 4
                  %s455 = smul.u32 %s453, 4
                  %s456 = scalar_lea.vmem %s439, %s454
                  %s457 = scalar_lea.vmem %s441, %s455 [#allocation2]
                $region66: #{down_forward.2} parent=53 // loop_footer
                  %s445 = sadd.s32 %s443, 1
                $region67: #{down_forward.2} parent=53 // loop_footer_branch
                  %442 = sbr.rel target = $region63
                $region68: #{down_forward.2} parent=53 // loop_exit
                  _
                %s459 = ssub.s32 16, 1
                %s460 = sshrl.u32 %s230, 4
                // While loop
                $region69: #{down_forward.2} parent=53 // loop_pre_header
                  _
                $region70: #{down_forward.2} parent=53 // loop_header
                  %s462 = sphi 0, %s464
                  %p463 = scmp.ge.s32.totalorder %s462, %s460
                  %s467 = sphi 0, %s600
                  %s468 = sphi %s229, %s603
                  %s469 = sphi %s217, %s604
                $region71: #{down_forward.2} parent=53 // loop_header_branch
                  %466 = sbr.rel (%p463) target = $region75
                $region72: #{down_forward.2} parent=53 // loop_body
                  %v470 = vld [vmem:[%s468] sm:%s459]
                  %471 = vst [vmem:[%s469] sm:%s459] %v470
                  %v472 = vld [vmem:[%s468 + $0x4] sm:%s459]
                  %473 = vst [vmem:[%s469 + $0x4] sm:%s459] %v472
                  %v474 = vld [vmem:[%s468 + $0x8] sm:%s459]
                  %475 = vst [vmem:[%s469 + $0x8] sm:%s459] %v474
                  %v476 = vld [vmem:[%s468 + $0xc] sm:%s459]
                  %477 = vst [vmem:[%s469 + $0xc] sm:%s459] %v476
                  %v478 = vld [vmem:[%s468 + $0x10] sm:%s459]
                  %479 = vst [vmem:[%s469 + $0x10] sm:%s459] %v478
                  %v480 = vld [vmem:[%s468 + $0x14] sm:%s459]
                  %481 = vst [vmem:[%s469 + $0x14] sm:%s459] %v480
                  %v482 = vld [vmem:[%s468 + $0x18] sm:%s459]
                  %483 = vst [vmem:[%s469 + $0x18] sm:%s459] %v482
                  %v484 = vld [vmem:[%s468 + $0x1c] sm:%s459]
                  %485 = vst [vmem:[%s469 + $0x1c] sm:%s459] %v484
                  %v486 = vld [vmem:[%s468 + $0x20] sm:%s459]
                  %487 = vst [vmem:[%s469 + $0x20] sm:%s459] %v486
                  %v488 = vld [vmem:[%s468 + $0x24] sm:%s459]
                  %489 = vst [vmem:[%s469 + $0x24] sm:%s459] %v488
                  %v490 = vld [vmem:[%s468 + $0x28] sm:%s459]
                  %491 = vst [vmem:[%s469 + $0x28] sm:%s459] %v490
                  %v492 = vld [vmem:[%s468 + $0x2c] sm:%s459]
                  %493 = vst [vmem:[%s469 + $0x2c] sm:%s459] %v492
                  %v494 = vld [vmem:[%s468 + $0x30] sm:%s459]
                  %495 = vst [vmem:[%s469 + $0x30] sm:%s459] %v494
                  %v496 = vld [vmem:[%s468 + $0x34] sm:%s459]
                  %497 = vst [vmem:[%s469 + $0x34] sm:%s459] %v496
                  %v498 = vld [vmem:[%s468 + $0x38] sm:%s459]
                  %499 = vst [vmem:[%s469 + $0x38] sm:%s459] %v498
                  %v500 = vld [vmem:[%s468 + $0x3c] sm:%s459]
                  %501 = vst [vmem:[%s469 + $0x3c] sm:%s459] %v500
                  %v502 = vld [vmem:[%s468 + $0x48] sm:%s459]
                  %503 = vst [vmem:[%s469 + $0x40] sm:%s459] %v502
                  %v504 = vld [vmem:[%s468 + $0x4c] sm:%s459]
                  %505 = vst [vmem:[%s469 + $0x44] sm:%s459] %v504
                  %v506 = vld [vmem:[%s468 + $0x50] sm:%s459]
                  %507 = vst [vmem:[%s469 + $0x48] sm:%s459] %v506
                  %v508 = vld [vmem:[%s468 + $0x54] sm:%s459]
                  %509 = vst [vmem:[%s469 + $0x4c] sm:%s459] %v508
                  %v510 = vld [vmem:[%s468 + $0x58] sm:%s459]
                  %511 = vst [vmem:[%s469 + $0x50] sm:%s459] %v510
                  %v512 = vld [vmem:[%s468 + $0x5c] sm:%s459]
                  %513 = vst [vmem:[%s469 + $0x54] sm:%s459] %v512
                  %v514 = vld [vmem:[%s468 + $0x60] sm:%s459]
                  %515 = vst [vmem:[%s469 + $0x58] sm:%s459] %v514
                  %v516 = vld [vmem:[%s468 + $0x64] sm:%s459]
                  %517 = vst [vmem:[%s469 + $0x5c] sm:%s459] %v516
                  %v518 = vld [vmem:[%s468 + $0x68] sm:%s459]
                  %519 = vst [vmem:[%s469 + $0x60] sm:%s459] %v518
                  %v520 = vld [vmem:[%s468 + $0x6c] sm:%s459]
                  %521 = vst [vmem:[%s469 + $0x64] sm:%s459] %v520
                  %v522 = vld [vmem:[%s468 + $0x70] sm:%s459]
                  %523 = vst [vmem:[%s469 + $0x68] sm:%s459] %v522
                  %v524 = vld [vmem:[%s468 + $0x74] sm:%s459]
                  %525 = vst [vmem:[%s469 + $0x6c] sm:%s459] %v524
                  %v526 = vld [vmem:[%s468 + $0x78] sm:%s459]
                  %527 = vst [vmem:[%s469 + $0x70] sm:%s459] %v526
                  %v528 = vld [vmem:[%s468 + $0x7c] sm:%s459]
                  %529 = vst [vmem:[%s469 + $0x74] sm:%s459] %v528
                  %v530 = vld [vmem:[%s468 + $0x80] sm:%s459]
                  %531 = vst [vmem:[%s469 + $0x78] sm:%s459] %v530
                  %v532 = vld [vmem:[%s468 + $0x84] sm:%s459]
                  %533 = vst [vmem:[%s469 + $0x7c] sm:%s459] %v532
                  %v534 = vld [vmem:[%s468 + $0x90] sm:%s459]
                  %535 = vst [vmem:[%s469 + $0x80] sm:%s459] %v534
                  %v536 = vld [vmem:[%s468 + $0x94] sm:%s459]
                  %537 = vst [vmem:[%s469 + $0x84] sm:%s459] %v536
                  %v538 = vld [vmem:[%s468 + $0x98] sm:%s459]
                  %539 = vst [vmem:[%s469 + $0x88] sm:%s459] %v538
                  %v540 = vld [vmem:[%s468 + $0x9c] sm:%s459]
                  %541 = vst [vmem:[%s469 + $0x8c] sm:%s459] %v540
                  %v542 = vld [vmem:[%s468 + $0xa0] sm:%s459]
                  %543 = vst [vmem:[%s469 + $0x90] sm:%s459] %v542
                  %v544 = vld [vmem:[%s468 + $0xa4] sm:%s459]
                  %545 = vst [vmem:[%s469 + $0x94] sm:%s459] %v544
                  %v546 = vld [vmem:[%s468 + $0xa8] sm:%s459]
                  %547 = vst [vmem:[%s469 + $0x98] sm:%s459] %v546
                  %v548 = vld [vmem:[%s468 + $0xac] sm:%s459]
                  %549 = vst [vmem:[%s469 + $0x9c] sm:%s459] %v548
                  %v550 = vld [vmem:[%s468 + $0xb0] sm:%s459]
                  %551 = vst [vmem:[%s469 + $0xa0] sm:%s459] %v550
                  %v552 = vld [vmem:[%s468 + $0xb4] sm:%s459]
                  %553 = vst [vmem:[%s469 + $0xa4] sm:%s459] %v552
                  %v554 = vld [vmem:[%s468 + $0xb8] sm:%s459]
                  %555 = vst [vmem:[%s469 + $0xa8] sm:%s459] %v554
                  %v556 = vld [vmem:[%s468 + $0xbc] sm:%s459]
                  %557 = vst [vmem:[%s469 + $0xac] sm:%s459] %v556
                  %v558 = vld [vmem:[%s468 + $0xc0] sm:%s459]
                  %559 = vst [vmem:[%s469 + $0xb0] sm:%s459] %v558
                  %v560 = vld [vmem:[%s468 + $0xc4] sm:%s459]
                  %561 = vst [vmem:[%s469 + $0xb4] sm:%s459] %v560
                  %v562 = vld [vmem:[%s468 + $0xc8] sm:%s459]
                  %563 = vst [vmem:[%s469 + $0xb8] sm:%s459] %v562
                  %v564 = vld [vmem:[%s468 + $0xcc] sm:%s459]
                  %565 = vst [vmem:[%s469 + $0xbc] sm:%s459] %v564
                  %v566 = vld [vmem:[%s468 + $0xd8] sm:%s459]
                  %567 = vst [vmem:[%s469 + $0xc0] sm:%s459] %v566
                  %v568 = vld [vmem:[%s468 + $0xdc] sm:%s459]
                  %569 = vst [vmem:[%s469 + $0xc4] sm:%s459] %v568
                  %v570 = vld [vmem:[%s468 + $0xe0] sm:%s459]
                  %571 = vst [vmem:[%s469 + $0xc8] sm:%s459] %v570
                  %v572 = vld [vmem:[%s468 + $0xe4] sm:%s459]
                  %573 = vst [vmem:[%s469 + $0xcc] sm:%s459] %v572
                  %v574 = vld [vmem:[%s468 + $0xe8] sm:%s459]
                  %575 = vst [vmem:[%s469 + $0xd0] sm:%s459] %v574
                  %v576 = vld [vmem:[%s468 + $0xec] sm:%s459]
                  %577 = vst [vmem:[%s469 + $0xd4] sm:%s459] %v576
                  %v578 = vld [vmem:[%s468 + $0xf0] sm:%s459]
                  %579 = vst [vmem:[%s469 + $0xd8] sm:%s459] %v578
                  %v580 = vld [vmem:[%s468 + $0xf4] sm:%s459]
                  %581 = vst [vmem:[%s469 + $0xdc] sm:%s459] %v580
                  %v582 = vld [vmem:[%s468 + $0xf8] sm:%s459]
                  %583 = vst [vmem:[%s469 + $0xe0] sm:%s459] %v582
                  %v584 = vld [vmem:[%s468 + $0xfc] sm:%s459]
                  %585 = vst [vmem:[%s469 + $0xe4] sm:%s459] %v584
                  %v586 = vld [vmem:[%s468 + $0x100] sm:%s459]
                  %587 = vst [vmem:[%s469 + $0xe8] sm:%s459] %v586
                  %v588 = vld [vmem:[%s468 + $0x104] sm:%s459]
                  %589 = vst [vmem:[%s469 + $0xec] sm:%s459] %v588
                  %v590 = vld [vmem:[%s468 + $0x108] sm:%s459]
                  %591 = vst [vmem:[%s469 + $0xf0] sm:%s459] %v590
                  %v592 = vld [vmem:[%s468 + $0x10c] sm:%s459]
                  %593 = vst [vmem:[%s469 + $0xf4] sm:%s459] %v592
                  %v594 = vld [vmem:[%s468 + $0x110] sm:%s459]
                  %595 = vst [vmem:[%s469 + $0xf8] sm:%s459] %v594
                  %v596 = vld [vmem:[%s468 + $0x114] sm:%s459]
                  %597 = vst [vmem:[%s469 + $0xfc] sm:%s459] %v596
                  %s598 = sadd.s32 1, %s467
                  %p599 = scmp.ge.s32.totalorder %s598, %s460
                  %s600 = scalar_select %p599, 0, %s598
                  %s601 = smul.u32 %s600, 64
                  %s602 = smul.u32 %s600, 64
                  %s603 = scalar_lea.vmem %s229, %s601
                  %s604 = scalar_lea.vmem %s217, %s602 [#allocation2]
                $region73: #{down_forward.2} parent=53 // loop_footer
                  %s464 = sadd.s32 %s462, 1
                $region74: #{down_forward.2} parent=53 // loop_footer_branch
                  %461 = sbr.rel target = $region70
                $region75: #{down_forward.2} parent=53 // loop_exit
                  _
                %s605 = sshrl.u32 %s230, 4
                %s606 = sand.u32 %s230, 15
                %s607 = smul.u32 %s605, 16
                %s608 = smul.u32 4, %s607
                %s609 = scalar_lea.vmem %s229, %s608
                %s610 = smul.u32 4, %s607
                %s611 = scalar_lea.vmem %s217, %s610 [#allocation2]
                // While loop
                $region76: #{down_forward.2} parent=53 // loop_pre_header
                  _
                $region77: #{down_forward.2} parent=53 // loop_header
                  %s613 = sphi 0, %s615
                  %p614 = scmp.ge.s32.totalorder %s613, %s606
                  %s618 = sphi 0, %s631
                  %s619 = sphi %s609, %s634
                  %s620 = sphi %s611, %s635
                $region78: #{down_forward.2} parent=53 // loop_header_branch
                  %617 = sbr.rel (%p614) target = $region82
                $region79: #{down_forward.2} parent=53 // loop_body
                  %v621 = vld [vmem:[%s619] sm:%s459]
                  %622 = vst [vmem:[%s620] sm:%s459] %v621
                  %v623 = vld [vmem:[%s619 + $0x48] sm:%s459]
                  %624 = vst [vmem:[%s620 + $0x40] sm:%s459] %v623
                  %v625 = vld [vmem:[%s619 + $0x90] sm:%s459]
                  %626 = vst [vmem:[%s620 + $0x80] sm:%s459] %v625
                  %v627 = vld [vmem:[%s619 + $0xd8] sm:%s459]
                  %628 = vst [vmem:[%s620 + $0xc0] sm:%s459] %v627
                  %s629 = sadd.s32 1, %s618
                  %p630 = scmp.ge.s32.totalorder %s629, %s606
                  %s631 = scalar_select %p630, 0, %s629
                  %s632 = smul.u32 %s631, 4
                  %s633 = smul.u32 %s631, 4
                  %s634 = scalar_lea.vmem %s609, %s632
                  %s635 = scalar_lea.vmem %s611, %s633 [#allocation2]
                $region80: #{down_forward.2} parent=53 // loop_footer
                  %s615 = sadd.s32 %s613, 1
                $region81: #{down_forward.2} parent=53 // loop_footer_branch
                  %612 = sbr.rel target = $region77
                $region82: #{down_forward.2} parent=53 // loop_exit
                  _
              $region54: #{down_forward.2} parent=31 // pred_fallthru
                _
            $region32: #{down_forward.2} parent=27 // pred_fallthru
              _
            // Predicated region
            $region33: #{down_forward.2} parent=27 // pred_check
              _
            $region34: #{down_forward.2} parent=27 // pred_check_branch
              %237 = sbr.rel (0) target = $region36
            $region35: #{down_forward.2} parent=27 // pred_region
              %s239 = ssub.s32 16, 1
              %s240 = sshrl.u32 %s230, 4
              // While loop
              $region37: #{down_forward.2} parent=35 // loop_pre_header
                _
              $region38: #{down_forward.2} parent=35 // loop_header
                %s242 = sphi 0, %s244
                %p243 = scmp.ge.s32.totalorder %s242, %s240
                %s247 = sphi 0, %s380
                %s248 = sphi %s229, %s383
                %s249 = sphi %s217, %s384
              $region39: #{down_forward.2} parent=35 // loop_header_branch
                %246 = sbr.rel (%p243) target = $region43
              $region40: #{down_forward.2} parent=35 // loop_body
                %v250 = vld [vmem:[%s248] sm:%s239]
                %251 = vst [vmem:[%s249] sm:%s239] %v250
                %v252 = vld [vmem:[%s248 + $0x4] sm:%s239]
                %253 = vst [vmem:[%s249 + $0x4] sm:%s239] %v252
                %v254 = vld [vmem:[%s248 + $0x8] sm:%s239]
                %255 = vst [vmem:[%s249 + $0x8] sm:%s239] %v254
                %v256 = vld [vmem:[%s248 + $0xc] sm:%s239]
                %257 = vst [vmem:[%s249 + $0xc] sm:%s239] %v256
                %v258 = vld [vmem:[%s248 + $0x10] sm:%s239]
                %259 = vst [vmem:[%s249 + $0x10] sm:%s239] %v258
                %v260 = vld [vmem:[%s248 + $0x14] sm:%s239]
                %261 = vst [vmem:[%s249 + $0x14] sm:%s239] %v260
                %v262 = vld [vmem:[%s248 + $0x18] sm:%s239]
                %263 = vst [vmem:[%s249 + $0x18] sm:%s239] %v262
                %v264 = vld [vmem:[%s248 + $0x1c] sm:%s239]
                %265 = vst [vmem:[%s249 + $0x1c] sm:%s239] %v264
                %v266 = vld [vmem:[%s248 + $0x20] sm:%s239]
                %267 = vst [vmem:[%s249 + $0x20] sm:%s239] %v266
                %v268 = vld [vmem:[%s248 + $0x24] sm:%s239]
                %269 = vst [vmem:[%s249 + $0x24] sm:%s239] %v268
                %v270 = vld [vmem:[%s248 + $0x28] sm:%s239]
                %271 = vst [vmem:[%s249 + $0x28] sm:%s239] %v270
                %v272 = vld [vmem:[%s248 + $0x2c] sm:%s239]
                %273 = vst [vmem:[%s249 + $0x2c] sm:%s239] %v272
                %v274 = vld [vmem:[%s248 + $0x30] sm:%s239]
                %275 = vst [vmem:[%s249 + $0x30] sm:%s239] %v274
                %v276 = vld [vmem:[%s248 + $0x34] sm:%s239]
                %277 = vst [vmem:[%s249 + $0x34] sm:%s239] %v276
                %v278 = vld [vmem:[%s248 + $0x38] sm:%s239]
                %279 = vst [vmem:[%s249 + $0x38] sm:%s239] %v278
                %v280 = vld [vmem:[%s248 + $0x3c] sm:%s239]
                %281 = vst [vmem:[%s249 + $0x3c] sm:%s239] %v280
                %v282 = vld [vmem:[%s248 + $0x48] sm:%s239]
                %283 = vst [vmem:[%s249 + $0x40] sm:%s239] %v282
                %v284 = vld [vmem:[%s248 + $0x4c] sm:%s239]
                %285 = vst [vmem:[%s249 + $0x44] sm:%s239] %v284
                %v286 = vld [vmem:[%s248 + $0x50] sm:%s239]
                %287 = vst [vmem:[%s249 + $0x48] sm:%s239] %v286
                %v288 = vld [vmem:[%s248 + $0x54] sm:%s239]
                %289 = vst [vmem:[%s249 + $0x4c] sm:%s239] %v288
                %v290 = vld [vmem:[%s248 + $0x58] sm:%s239]
                %291 = vst [vmem:[%s249 + $0x50] sm:%s239] %v290
                %v292 = vld [vmem:[%s248 + $0x5c] sm:%s239]
                %293 = vst [vmem:[%s249 + $0x54] sm:%s239] %v292
                %v294 = vld [vmem:[%s248 + $0x60] sm:%s239]
                %295 = vst [vmem:[%s249 + $0x58] sm:%s239] %v294
                %v296 = vld [vmem:[%s248 + $0x64] sm:%s239]
                %297 = vst [vmem:[%s249 + $0x5c] sm:%s239] %v296
                %v298 = vld [vmem:[%s248 + $0x68] sm:%s239]
                %299 = vst [vmem:[%s249 + $0x60] sm:%s239] %v298
                %v300 = vld [vmem:[%s248 + $0x6c] sm:%s239]
                %301 = vst [vmem:[%s249 + $0x64] sm:%s239] %v300
                %v302 = vld [vmem:[%s248 + $0x70] sm:%s239]
                %303 = vst [vmem:[%s249 + $0x68] sm:%s239] %v302
                %v304 = vld [vmem:[%s248 + $0x74] sm:%s239]
                %305 = vst [vmem:[%s249 + $0x6c] sm:%s239] %v304
                %v306 = vld [vmem:[%s248 + $0x78] sm:%s239]
                %307 = vst [vmem:[%s249 + $0x70] sm:%s239] %v306
                %v308 = vld [vmem:[%s248 + $0x7c] sm:%s239]
                %309 = vst [vmem:[%s249 + $0x74] sm:%s239] %v308
                %v310 = vld [vmem:[%s248 + $0x80] sm:%s239]
                %311 = vst [vmem:[%s249 + $0x78] sm:%s239] %v310
                %v312 = vld [vmem:[%s248 + $0x84] sm:%s239]
                %313 = vst [vmem:[%s249 + $0x7c] sm:%s239] %v312
                %v314 = vld [vmem:[%s248 + $0x90] sm:%s239]
                %315 = vst [vmem:[%s249 + $0x80] sm:%s239] %v314
                %v316 = vld [vmem:[%s248 + $0x94] sm:%s239]
                %317 = vst [vmem:[%s249 + $0x84] sm:%s239] %v316
                %v318 = vld [vmem:[%s248 + $0x98] sm:%s239]
                %319 = vst [vmem:[%s249 + $0x88] sm:%s239] %v318
                %v320 = vld [vmem:[%s248 + $0x9c] sm:%s239]
                %321 = vst [vmem:[%s249 + $0x8c] sm:%s239] %v320
                %v322 = vld [vmem:[%s248 + $0xa0] sm:%s239]
                %323 = vst [vmem:[%s249 + $0x90] sm:%s239] %v322
                %v324 = vld [vmem:[%s248 + $0xa4] sm:%s239]
                %325 = vst [vmem:[%s249 + $0x94] sm:%s239] %v324
                %v326 = vld [vmem:[%s248 + $0xa8] sm:%s239]
                %327 = vst [vmem:[%s249 + $0x98] sm:%s239] %v326
                %v328 = vld [vmem:[%s248 + $0xac] sm:%s239]
                %329 = vst [vmem:[%s249 + $0x9c] sm:%s239] %v328
                %v330 = vld [vmem:[%s248 + $0xb0] sm:%s239]
                %331 = vst [vmem:[%s249 + $0xa0] sm:%s239] %v330
                %v332 = vld [vmem:[%s248 + $0xb4] sm:%s239]
                %333 = vst [vmem:[%s249 + $0xa4] sm:%s239] %v332
                %v334 = vld [vmem:[%s248 + $0xb8] sm:%s239]
                %335 = vst [vmem:[%s249 + $0xa8] sm:%s239] %v334
                %v336 = vld [vmem:[%s248 + $0xbc] sm:%s239]
                %337 = vst [vmem:[%s249 + $0xac] sm:%s239] %v336
                %v338 = vld [vmem:[%s248 + $0xc0] sm:%s239]
                %339 = vst [vmem:[%s249 + $0xb0] sm:%s239] %v338
                %v340 = vld [vmem:[%s248 + $0xc4] sm:%s239]
                %341 = vst [vmem:[%s249 + $0xb4] sm:%s239] %v340
                %v342 = vld [vmem:[%s248 + $0xc8] sm:%s239]
                %343 = vst [vmem:[%s249 + $0xb8] sm:%s239] %v342
                %v344 = vld [vmem:[%s248 + $0xcc] sm:%s239]
                %345 = vst [vmem:[%s249 + $0xbc] sm:%s239] %v344
                %v346 = vld [vmem:[%s248 + $0xd8] sm:%s239]
                %347 = vst [vmem:[%s249 + $0xc0] sm:%s239] %v346
                %v348 = vld [vmem:[%s248 + $0xdc] sm:%s239]
                %349 = vst [vmem:[%s249 + $0xc4] sm:%s239] %v348
                %v350 = vld [vmem:[%s248 + $0xe0] sm:%s239]
                %351 = vst [vmem:[%s249 + $0xc8] sm:%s239] %v350
                %v352 = vld [vmem:[%s248 + $0xe4] sm:%s239]
                %353 = vst [vmem:[%s249 + $0xcc] sm:%s239] %v352
                %v354 = vld [vmem:[%s248 + $0xe8] sm:%s239]
                %355 = vst [vmem:[%s249 + $0xd0] sm:%s239] %v354
                %v356 = vld [vmem:[%s248 + $0xec] sm:%s239]
                %357 = vst [vmem:[%s249 + $0xd4] sm:%s239] %v356
                %v358 = vld [vmem:[%s248 + $0xf0] sm:%s239]
                %359 = vst [vmem:[%s249 + $0xd8] sm:%s239] %v358
                %v360 = vld [vmem:[%s248 + $0xf4] sm:%s239]
                %361 = vst [vmem:[%s249 + $0xdc] sm:%s239] %v360
                %v362 = vld [vmem:[%s248 + $0xf8] sm:%s239]
                %363 = vst [vmem:[%s249 + $0xe0] sm:%s239] %v362
                %v364 = vld [vmem:[%s248 + $0xfc] sm:%s239]
                %365 = vst [vmem:[%s249 + $0xe4] sm:%s239] %v364
                %v366 = vld [vmem:[%s248 + $0x100] sm:%s239]
                %367 = vst [vmem:[%s249 + $0xe8] sm:%s239] %v366
                %v368 = vld [vmem:[%s248 + $0x104] sm:%s239]
                %369 = vst [vmem:[%s249 + $0xec] sm:%s239] %v368
                %v370 = vld [vmem:[%s248 + $0x108] sm:%s239]
                %371 = vst [vmem:[%s249 + $0xf0] sm:%s239] %v370
                %v372 = vld [vmem:[%s248 + $0x10c] sm:%s239]
                %373 = vst [vmem:[%s249 + $0xf4] sm:%s239] %v372
                %v374 = vld [vmem:[%s248 + $0x110] sm:%s239]
                %375 = vst [vmem:[%s249 + $0xf8] sm:%s239] %v374
                %v376 = vld [vmem:[%s248 + $0x114] sm:%s239]
                %377 = vst [vmem:[%s249 + $0xfc] sm:%s239] %v376
                %s378 = sadd.s32 1, %s247
                %p379 = scmp.ge.s32.totalorder %s378, %s240
                %s380 = scalar_select %p379, 0, %s378
                %s381 = smul.u32 %s380, 64
                %s382 = smul.u32 %s380, 64
                %s383 = scalar_lea.vmem %s229, %s381
                %s384 = scalar_lea.vmem %s217, %s382 [#allocation2]
              $region41: #{down_forward.2} parent=35 // loop_footer
                %s244 = sadd.s32 %s242, 1
              $region42: #{down_forward.2} parent=35 // loop_footer_branch
                %241 = sbr.rel target = $region38
              $region43: #{down_forward.2} parent=35 // loop_exit
                _
              %s385 = sshrl.u32 %s230, 4
              %s386 = sand.u32 %s230, 15
              %s387 = smul.u32 %s385, 16
              %s388 = smul.u32 4, %s387
              %s389 = scalar_lea.vmem %s229, %s388
              %s390 = smul.u32 4, %s387
              %s391 = scalar_lea.vmem %s217, %s390 [#allocation2]
              // While loop
              $region44: #{down_forward.2} parent=35 // loop_pre_header
                _
              $region45: #{down_forward.2} parent=35 // loop_header
                %s393 = sphi 0, %s395
                %p394 = scmp.ge.s32.totalorder %s393, %s386
                %s398 = sphi 0, %s411
                %s399 = sphi %s389, %s414
                %s400 = sphi %s391, %s415
              $region46: #{down_forward.2} parent=35 // loop_header_branch
                %397 = sbr.rel (%p394) target = $region50
              $region47: #{down_forward.2} parent=35 // loop_body
                %v401 = vld [vmem:[%s399] sm:%s239]
                %402 = vst [vmem:[%s400] sm:%s239] %v401
                %v403 = vld [vmem:[%s399 + $0x48] sm:%s239]
                %404 = vst [vmem:[%s400 + $0x40] sm:%s239] %v403
                %v405 = vld [vmem:[%s399 + $0x90] sm:%s239]
                %406 = vst [vmem:[%s400 + $0x80] sm:%s239] %v405
                %v407 = vld [vmem:[%s399 + $0xd8] sm:%s239]
                %408 = vst [vmem:[%s400 + $0xc0] sm:%s239] %v407
                %s409 = sadd.s32 1, %s398
                %p410 = scmp.ge.s32.totalorder %s409, %s386
                %s411 = scalar_select %p410, 0, %s409
                %s412 = smul.u32 %s411, 4
                %s413 = smul.u32 %s411, 4
                %s414 = scalar_lea.vmem %s389, %s412
                %s415 = scalar_lea.vmem %s391, %s413 [#allocation2]
              $region48: #{down_forward.2} parent=35 // loop_footer
                %s395 = sadd.s32 %s393, 1
              $region49: #{down_forward.2} parent=35 // loop_footer_branch
                %392 = sbr.rel target = $region45
              $region50: #{down_forward.2} parent=35 // loop_exit
                _
            $region36: #{down_forward.2} parent=27 // pred_fallthru
              _
          $region28: #{down_forward.2} parent=23 // pred_fallthru
            _
          %636 = vnop
        $region24: #{down_forward.2} parent=19 // pred_fallthru
          _
        // Predicated region
        $region83: #{down_forward.2} parent=19 // pred_check
          %p637 = pneg %p78
        $region84: #{down_forward.2} parent=19 // pred_check_branch
          %639 = sbr.rel (%p637) target = $region86
        $region85: #{down_forward.2} parent=19 // pred_region
          %s640 = sand.u32 %s68, 1
          %s641 = sand.u32 %s68, 1
          %s642 = smul.addr %s641, 16
          %s643 = scalar_lea.vmem [#allocation3], %s642
          %s644 = sadd.s32 %s20, 1
          %s645 = smul.u32 %s644, 8
          %s646 = smul.addr %s645, 2
          %s647 = smul.addr %s19, 72
          %s648 = sadd.s32 %s646, %s647
          %s649 = smul.addr %s648, 4
          %s650 = scalar_lea.vmem %s1, %s649
          // Predicated region
          $region87: #{down_forward.2} parent=85 // pred_check
            _
          $region88: #{down_forward.2} parent=85 // pred_check_branch
            %652 = sbr.rel (0) target = $region90
          $region89: #{down_forward.2} parent=85 // pred_region
            // Predicated region
            $region91: #{down_forward.2} parent=89 // pred_check
              _
            $region92: #{down_forward.2} parent=89 // pred_check_branch
              %654 = sbr.rel target = $region94
            $region93: #{down_forward.2} parent=89 // pred_region
              // Predicated region
              $region106: #{down_forward.2} parent=93 // pred_check
                _
              $region107: #{down_forward.2} parent=93 // pred_check_branch
                %676 = sbr.rel (0) target = $region109
              $region108: #{down_forward.2} parent=93 // pred_region
                loop: start=0, step=1, limit=1
                $region110: #{down_forward.2} parent=108 // loop_pre_header
                  _
                $region111: #{down_forward.2} parent=108 // loop_header
                  %s678 = sphi 0, %s682
                  %p679 = scmp.ge.s32.totalorder %s678, 1
                  %s683 = sphi %s650, %s650
                  %s684 = sphi %s643, %s643
                $region112: #{down_forward.2} parent=108 // loop_header_branch
                  %681 = sbr.rel (%p679) target = $region116
                $region113: #{down_forward.2} parent=108 // loop_body
                  _
                $region114: #{down_forward.2} parent=108 // loop_footer
                  %s682 = sadd.s32 1, %s678
                $region115: #{down_forward.2} parent=108 // loop_footer_branch
                  %677 = sbr.rel target = $region111
                $region116: #{down_forward.2} parent=108 // loop_exit
                  _
                %s686 = ssub.s32 16, 1
                loop: start=0, step=1, limit=1
                $region117: #{down_forward.2} parent=108 // loop_pre_header
                  _
                $region118: #{down_forward.2} parent=108 // loop_header
                  %s688 = sphi 0, %s692
                  %p689 = scmp.ge.s32.totalorder %s688, 1
                  %s693 = sphi %s650, %s650
                  %s694 = sphi %s643, %s643
                $region119: #{down_forward.2} parent=108 // loop_header_branch
                  %691 = sbr.rel (%p689) target = $region123
                $region120: #{down_forward.2} parent=108 // loop_body
                  %v695 = vld [vmem:[%s693] sm:%s686]
                  %696 = vst [vmem:[%s694] sm:%s686] %v695
                  %v697 = vld [vmem:[%s693 + $0x4] sm:%s686]
                  %698 = vst [vmem:[%s694 + $0x4] sm:%s686] %v697
                  %v699 = vld [vmem:[%s693 + $0x48] sm:%s686]
                  %700 = vst [vmem:[%s694 + $0x8] sm:%s686] %v699
                  %v701 = vld [vmem:[%s693 + $0x4c] sm:%s686]
                  %702 = vst [vmem:[%s694 + $0xc] sm:%s686] %v701
                $region121: #{down_forward.2} parent=108 // loop_footer
                  %s692 = sadd.s32 1, %s688
                $region122: #{down_forward.2} parent=108 // loop_footer_branch
                  %687 = sbr.rel target = $region118
                $region123: #{down_forward.2} parent=108 // loop_exit
                  _
              $region109: #{down_forward.2} parent=93 // pred_fallthru
                _
            $region94: #{down_forward.2} parent=89 // pred_fallthru
              _
            // Predicated region
            $region95: #{down_forward.2} parent=89 // pred_check
              _
            $region96: #{down_forward.2} parent=89 // pred_check_branch
              %656 = sbr.rel (0) target = $region98
            $region97: #{down_forward.2} parent=89 // pred_region
              %s658 = ssub.s32 16, 1
              loop: start=0, step=1, limit=1
              $region99: #{down_forward.2} parent=97 // loop_pre_header
                _
              $region100: #{down_forward.2} parent=97 // loop_header
                %s660 = sphi 0, %s664
                %p661 = scmp.ge.s32.totalorder %s660, 1
                %s665 = sphi %s650, %s650
                %s666 = sphi %s643, %s643
              $region101: #{down_forward.2} parent=97 // loop_header_branch
                %663 = sbr.rel (%p661) target = $region105
              $region102: #{down_forward.2} parent=97 // loop_body
                %v667 = vld [vmem:[%s665] sm:%s658]
                %668 = vst [vmem:[%s666] sm:%s658] %v667
                %v669 = vld [vmem:[%s665 + $0x4] sm:%s658]
                %670 = vst [vmem:[%s666 + $0x4] sm:%s658] %v669
                %v671 = vld [vmem:[%s665 + $0x48] sm:%s658]
                %672 = vst [vmem:[%s666 + $0x8] sm:%s658] %v671
                %v673 = vld [vmem:[%s665 + $0x4c] sm:%s658]
                %674 = vst [vmem:[%s666 + $0xc] sm:%s658] %v673
              $region103: #{down_forward.2} parent=97 // loop_footer
                %s664 = sadd.s32 1, %s660
              $region104: #{down_forward.2} parent=97 // loop_footer_branch
                %659 = sbr.rel target = $region100
              $region105: #{down_forward.2} parent=97 // loop_exit
                _
            $region98: #{down_forward.2} parent=89 // pred_fallthru
              _
          $region90: #{down_forward.2} parent=85 // pred_fallthru
            _
          %703 = vnop
        $region86: #{down_forward.2} parent=19 // pred_fallthru
          _
      $region20: #{down_forward.2} parent=5 // pred_fallthru
        _
      %p704 = scmp.le.s32.totalorder 1, %s12
      %p705 = scmp.lt.s32.totalorder %s12, 3
      %p706 = pnand %p704, %p705
      %p707 = pneg %p706
      // Predicated region
      $region124: #{down_forward.2} parent=5 // pred_check
        _
      $region125: #{down_forward.2} parent=5 // pred_check_branch
        %709 = sbr.rel (%p706) target = $region127
      $region126: #{down_forward.2} parent=5 // pred_region
        %s710 = ssub.s32 %s12, 1
        %s711 = sand.u32 %s39, 1
        %s712 = sand.u32 %s39, 1
        %s713 = smul.addr %s712, 256
        %s714 = scalar_lea.vmem [#allocation2], %s713
        // Predicated region
        $region128: #{down_forward.2} parent=126 // pred_check
          %p715 = pneg %p52
        $region129: #{down_forward.2} parent=126 // pred_check_branch
          %717 = sbr.rel (%p715) target = $region131
        $region130: #{down_forward.2} parent=126 // pred_region
          _
        $region131: #{down_forward.2} parent=126 // pred_fallthru
          _
        %s718 = sand.u32 %s71, 1
        %s719 = sand.u32 %s71, 1
        %s720 = smul.addr %s719, 16
        %s721 = scalar_lea.vmem [#allocation3], %s720
        // Predicated region
        $region132: #{down_forward.2} parent=126 // pred_check
          %p722 = pneg %p84
        $region133: #{down_forward.2} parent=126 // pred_check_branch
          %724 = sbr.rel (%p722) target = $region135
        $region134: #{down_forward.2} parent=126 // pred_region
          _
        $region135: #{down_forward.2} parent=126 // pred_fallthru
          _
        %s725 = sand.u32 %s39, 1
        %s726 = sand.u32 %s39, 1
        %s727 = smul.addr %s726, 256
        %s728 = scalar_lea.vmem [#allocation2], %s727
        %p729 = pneg %p52
        %p730 = pneg %p49
        %s731 = sand.u32 %s71, 1
        %s732 = sand.u32 %s71, 1
        %s733 = smul.addr %s732, 16
        %s734 = scalar_lea.vmem [#allocation3], %s733
        %p735 = pneg %p84
        %p736 = pneg %p81
        %p737 = pneg %p105
        %p738 = pneg %p102
        %p739 = pneg %p133
        %p740 = pneg %p130
        %s741 = smul.u32 8, %s22
        %p742 = scmp.lt.s32.totalorder %s21, 1
        %s743 = scalar_select %p742, %s21, 1
        %p744 = scmp.lt.s32.totalorder %s741, 7
        %s745 = scalar_select %p744, %s741, 7
        %s746 = smul.addr %s743, 8
        %s747 = sadd.s32 %s745, %s746
        %s748 = smul.addr %s747, 4
        %s749 = scalar_lea.vmem %s3, %s748
        %p750 = pneg %p161
        %p751 = pneg %p158
        %p752 = scmp.lt.s32.totalorder %s21, 1
        %s753 = scalar_select %p752, %s21, 1
        %p754 = scmp.lt.s32.totalorder %s22, 0
        %s755 = scalar_select %p754, %s22, 0
        %s756 = sadd.s32 %s755, %s753
        %s757 = scalar_lea.vmem %s4, %s756
        %p758 = pneg %p189
        %p759 = pneg %p186
        %p760 = scmp.lt.s32.totalorder %s21, 1
        %s761 = scalar_select %p760, %s21, 1
        %p762 = scmp.lt.s32.totalorder %s22, 0
        %s763 = scalar_select %p762, %s22, 0
        %s764 = sadd.s32 %s763, %s761
        %s765 = scalar_lea.vmem %s5, %s764
        %s766 = smul.u32 8, %s22
        %s767 = ssub.s32 9, %s766
        %p768 = scmp.lt.s32.totalorder %s767, 8
        %s769 = scalar_select %p768, %s767, 8
        %s770 = smul.u32 256, %s769
        %s771 = smul.u32 %s770, 2
        %s772 = sadd.s32 %s22, 1
        %s773 = smul.u32 %s772, 8
        %s774 = smul.u32 8, %s22
        %p775 = scmp.lt.s32.totalorder %s21, 1
        %s776 = scalar_select %p775, %s21, 1
        %p777 = scmp.lt.s32.totalorder %s774, 7
        %s778 = scalar_select %p777, %s774, 7
        %s779 = smul.addr %s776, 8
        %s780 = sadd.s32 %s778, %s779
        %s781 = smul.addr %s780, 4
        %s782 = scalar_lea.vmem %s3, %s781
        %s783 = smul.u32 8, %s22
        %p784 = scmp.lt.s32.totalorder %s21, 1
        %s785 = scalar_select %p784, %s21, 1
        %p786 = scmp.lt.s32.totalorder %s22, 0
        %s787 = scalar_select %p786, %s22, 0
        %s788 = sadd.s32 %s787, %s785
        %s789 = scalar_lea.vmem %s4, %s788
        %p790 = scmp.lt.s32.totalorder %s21, 1
        %s791 = scalar_select %p790, %s21, 1
        %p792 = scmp.lt.s32.totalorder %s22, 0
        %s793 = scalar_select %p792, %s22, 0
        %s794 = sadd.s32 %s793, %s791
        %s795 = scalar_lea.vmem %s5, %s794
        %v797 = vld [vmem:[%s714] sm:$0xf]
        %v798 = vld [vmem:[%s714 + $0x4] sm:$0x1]
        %v799 = vld [vmem:[%s714 + $0x8] sm:$0xf]
        %v800 = vld [vmem:[%s714 + $0xc] sm:$0x1]
        %v801 = vld [vmem:[%s714 + $0x10] sm:$0xf]
        %v802 = vld [vmem:[%s714 + $0x14] sm:$0x1]
        %v803 = vld [vmem:[%s714 + $0x18] sm:$0xf]
        %v804 = vld [vmem:[%s714 + $0x1c] sm:$0x1]
        %v805 = vld [vmem:[%s714 + $0x20] sm:$0xf]
        %v806 = vld [vmem:[%s714 + $0x24] sm:$0x1]
        %v807 = vld [vmem:[%s714 + $0x28] sm:$0xf]
        %v808 = vld [vmem:[%s714 + $0x2c] sm:$0x1]
        %v809 = vld [vmem:[%s714 + $0x30] sm:$0xf]
        %v810 = vld [vmem:[%s714 + $0x34] sm:$0x1]
        %v811 = vld [vmem:[%s714 + $0x38] sm:$0xf]
        %v812 = vld [vmem:[%s714 + $0x3c] sm:$0x1]
        %v813 = vld [vmem:[%s714 + $0x40] sm:$0xf]
        %v814 = vld [vmem:[%s714 + $0x48] sm:$0xf]
        %v815 = vld [vmem:[%s714 + $0x50] sm:$0xf]
        %v816 = vld [vmem:[%s714 + $0x58] sm:$0xf]
        %v817 = vld [vmem:[%s714 + $0x60] sm:$0xf]
        %v818 = vld [vmem:[%s714 + $0x68] sm:$0xf]
        %v819 = vld [vmem:[%s714 + $0x70] sm:$0xf]
        %v820 = vld [vmem:[%s714 + $0x78] sm:$0xf]
        %v821 = vld [vmem:[%s714 + $0x80] sm:$0xf]
        %v822 = vld [vmem:[%s714 + $0x84] sm:$0x1]
        %v823 = vld [vmem:[%s714 + $0x88] sm:$0xf]
        %v824 = vld [vmem:[%s714 + $0x8c] sm:$0x1]
        %v825 = vld [vmem:[%s714 + $0x90] sm:$0xf]
        %v826 = vld [vmem:[%s714 + $0x94] sm:$0x1]
        %v827 = vld [vmem:[%s714 + $0x98] sm:$0xf]
        %v828 = vld [vmem:[%s714 + $0x9c] sm:$0x1]
        %v829 = vld [vmem:[%s714 + $0xa0] sm:$0xf]
        %v830 = vld [vmem:[%s714 + $0xa4] sm:$0x1]
        %v831 = vld [vmem:[%s714 + $0xa8] sm:$0xf]
        %v832 = vld [vmem:[%s714 + $0xac] sm:$0x1]
        %v833 = vld [vmem:[%s714 + $0xb0] sm:$0xf]
        %v834 = vld [vmem:[%s714 + $0xb4] sm:$0x1]
        %v835 = vld [vmem:[%s714 + $0xb8] sm:$0xf]
        %v836 = vld [vmem:[%s714 + $0xbc] sm:$0x1]
        %v837 = vld [vmem:[%s714 + $0xc0] sm:$0xf]
        %v838 = vld [vmem:[%s714 + $0xc8] sm:$0xf]
        %v839 = vld [vmem:[%s714 + $0xd0] sm:$0xf]
        %v840 = vld [vmem:[%s714 + $0xd8] sm:$0xf]
        %v841 = vld [vmem:[%s714 + $0xe0] sm:$0xf]
        %v842 = vld [vmem:[%s714 + $0xe8] sm:$0xf]
        %v843 = vld [vmem:[%s714 + $0xf0] sm:$0xf]
        %v844 = vld [vmem:[%s714 + $0xf8] sm:$0xf]
        %v845 = vld [vmem:[%s721] sm:$0xf]
        %v846 = vld [vmem:[%s721 + $0x4] sm:$0x1]
        %v847 = vld [vmem:[%s721 + $0x8] sm:$0xf]
        %v856 = vunpack.c.l.b16 %v813
        %v857 = vunpack.c.l.b16 %v814
        %v858 = vunpack.c.l.b16 %v815
        %v859 = vunpack.c.l.b16 %v816
        %v860 = vunpack.c.l.b16 %v817
        %v861 = vunpack.c.l.b16 %v818
        %v862 = vunpack.c.l.b16 %v819
        %v863 = vunpack.c.l.b16 %v820
        %v864 = vpack.c.b16 %v856, %v856
        %v865 = vpack.c.b16 %v857, %v857
        %v866 = vpack.c.b16 %v858, %v858
        %v867 = vpack.c.b16 %v859, %v859
        %v868 = vpack.c.b16 %v860, %v860
        %v869 = vpack.c.b16 %v861, %v861
        %v870 = vpack.c.b16 %v862, %v862
        %v871 = vpack.c.b16 %v863, %v863
        %872 = vrot.lane.b32.xlu0 %v864, 4
        %v873 = vpop.permute.xlu0 %872
        %874 = vrot.lane.b32.xlu0 %v865, 4
        %v875 = vpop.permute.xlu0 %874
        %876 = vrot.lane.b32.xlu0 %v866, 4
        %v877 = vpop.permute.xlu0 %876
        %878 = vrot.lane.b32.xlu0 %v867, 4
        %v879 = vpop.permute.xlu0 %878
        %880 = vrot.lane.b32.xlu0 %v868, 4
        %v881 = vpop.permute.xlu0 %880
        %882 = vrot.lane.b32.xlu0 %v869, 4
        %v883 = vpop.permute.xlu0 %882
        %884 = vrot.lane.b32.xlu0 %v870, 4
        %v885 = vpop.permute.xlu0 %884
        %886 = vrot.lane.b32.xlu0 %v871, 4
        %v887 = vpop.permute.xlu0 %886
        %v904 = vunpack.c.l.b16 %v797
        %v905 = vunpack.c.l.b16 %v798
        %v906 = vunpack.c.l.b16 %v799
        %v907 = vunpack.c.l.b16 %v800
        %v908 = vunpack.c.l.b16 %v801
        %v909 = vunpack.c.l.b16 %v802
        %v910 = vunpack.c.l.b16 %v803
        %v911 = vunpack.c.l.b16 %v804
        %v912 = vunpack.c.l.b16 %v805
        %v913 = vunpack.c.l.b16 %v806
        %v914 = vunpack.c.l.b16 %v807
        %v915 = vunpack.c.l.b16 %v808
        %v916 = vunpack.c.l.b16 %v809
        %v917 = vunpack.c.l.b16 %v810
        %v918 = vunpack.c.l.b16 %v811
        %v919 = vunpack.c.l.b16 %v812
        %v920 = vpack.c.b16 %v905, %v904
        %v921 = vpack.c.b16 %v907, %v906
        %v922 = vpack.c.b16 %v909, %v908
        %v923 = vpack.c.b16 %v911, %v910
        %v924 = vpack.c.b16 %v913, %v912
        %v925 = vpack.c.b16 %v915, %v914
        %v926 = vpack.c.b16 %v917, %v916
        %v927 = vpack.c.b16 %v919, %v918
        %v929 = vshrl.u32 %v920, 16
        %v931 = vshll.u32 %v920, 16
        %v933 = vrot.slane %v931, 1
        %v934 = vor.u32 %v929, %v933
        %v936 = vshrl.u32 %v921, 16
        %v938 = vshll.u32 %v921, 16
        %v940 = vrot.slane %v938, 1
        %v941 = vor.u32 %v936, %v940
        %v943 = vshrl.u32 %v922, 16
        %v945 = vshll.u32 %v922, 16
        %v947 = vrot.slane %v945, 1
        %v948 = vor.u32 %v943, %v947
        %v950 = vshrl.u32 %v923, 16
        %v952 = vshll.u32 %v923, 16
        %v954 = vrot.slane %v952, 1
        %v955 = vor.u32 %v950, %v954
        %v957 = vshrl.u32 %v924, 16
        %v959 = vshll.u32 %v924, 16
        %v961 = vrot.slane %v959, 1
        %v962 = vor.u32 %v957, %v961
        %v964 = vshrl.u32 %v925, 16
        %v966 = vshll.u32 %v925, 16
        %v968 = vrot.slane %v966, 1
        %v969 = vor.u32 %v964, %v968
        %v971 = vshrl.u32 %v926, 16
        %v973 = vshll.u32 %v926, 16
        %v975 = vrot.slane %v973, 1
        %v976 = vor.u32 %v971, %v975
        %v978 = vshrl.u32 %v927, 16
        %v980 = vshll.u32 %v927, 16
        %v982 = vrot.slane %v980, 1
        %v983 = vor.u32 %v978, %v982
        %984 = vrot.lane.b32.xlu0 %v934, 8
        %v985 = vpop.permute.xlu0 %984
        %986 = vrot.lane.b32.xlu0 %v941, 8
        %v987 = vpop.permute.xlu0 %986
        %988 = vrot.lane.b32.xlu0 %v948, 8
        %v989 = vpop.permute.xlu0 %988
        %990 = vrot.lane.b32.xlu0 %v955, 8
        %v991 = vpop.permute.xlu0 %990
        %992 = vrot.lane.b32.xlu0 %v962, 8
        %v993 = vpop.permute.xlu0 %992
        %994 = vrot.lane.b32.xlu0 %v969, 8
        %v995 = vpop.permute.xlu0 %994
        %996 = vrot.lane.b32.xlu0 %v976, 8
        %v997 = vpop.permute.xlu0 %996
        %998 = vrot.lane.b32.xlu0 %v983, 8
        %v999 = vpop.permute.xlu0 %998
        %v1008 = vunpack.c.l.b16 %v821
        %v1009 = vunpack.c.l.b16 %v823
        %v1010 = vunpack.c.l.b16 %v825
        %v1011 = vunpack.c.l.b16 %v827
        %v1012 = vunpack.c.l.b16 %v829
        %v1013 = vunpack.c.l.b16 %v831
        %v1014 = vunpack.c.l.b16 %v833
        %v1015 = vunpack.c.l.b16 %v835
        %v1016 = vpack.c.b16 %v1008, %v1008
        %v1017 = vpack.c.b16 %v1009, %v1009
        %v1018 = vpack.c.b16 %v1010, %v1010
        %v1019 = vpack.c.b16 %v1011, %v1011
        %v1020 = vpack.c.b16 %v1012, %v1012
        %v1021 = vpack.c.b16 %v1013, %v1013
        %v1022 = vpack.c.b16 %v1014, %v1014
        %v1023 = vpack.c.b16 %v1015, %v1015
        %1024 = vrot.lane.b32.xlu0 %v1016, 12
        %v1025 = vpop.permute.xlu0 %1024
        %1026 = vrot.lane.b32.xlu0 %v1017, 12
        %v1027 = vpop.permute.xlu0 %1026
        %1028 = vrot.lane.b32.xlu0 %v1018, 12
        %v1029 = vpop.permute.xlu0 %1028
        %1030 = vrot.lane.b32.xlu0 %v1019, 12
        %v1031 = vpop.permute.xlu0 %1030
        %1032 = vrot.lane.b32.xlu0 %v1020, 12
        %v1033 = vpop.permute.xlu0 %1032
        %1034 = vrot.lane.b32.xlu0 %v1021, 12
        %v1035 = vpop.permute.xlu0 %1034
        %1036 = vrot.lane.b32.xlu0 %v1022, 12
        %v1037 = vpop.permute.xlu0 %1036
        %1038 = vrot.lane.b32.xlu0 %v1023, 12
        %v1039 = vpop.permute.xlu0 %1038
        %v1048 = vunpack.c.l.b16 %v837
        %v1049 = vunpack.c.l.b16 %v838
        %v1050 = vunpack.c.l.b16 %v839
        %v1051 = vunpack.c.l.b16 %v840
        %v1052 = vunpack.c.l.b16 %v841
        %v1053 = vunpack.c.l.b16 %v842
        %v1054 = vunpack.c.l.b16 %v843
        %v1055 = vunpack.c.l.b16 %v844
        %v1056 = vpack.c.b16 %v1048, %v1048
        %v1057 = vpack.c.b16 %v1049, %v1049
        %v1058 = vpack.c.b16 %v1050, %v1050
        %v1059 = vpack.c.b16 %v1051, %v1051
        %v1060 = vpack.c.b16 %v1052, %v1052
        %v1061 = vpack.c.b16 %v1053, %v1053
        %v1062 = vpack.c.b16 %v1054, %v1054
        %v1063 = vpack.c.b16 %v1055, %v1055
        %1064 = vrot.lane.b32.xlu0 %v1056, 16
        %v1065 = vpop.permute.xlu0 %1064
        %1066 = vrot.lane.b32.xlu0 %v1057, 16
        %v1067 = vpop.permute.xlu0 %1066
        %1068 = vrot.lane.b32.xlu0 %v1058, 16
        %v1069 = vpop.permute.xlu0 %1068
        %1070 = vrot.lane.b32.xlu0 %v1059, 16
        %v1071 = vpop.permute.xlu0 %1070
        %1072 = vrot.lane.b32.xlu0 %v1060, 16
        %v1073 = vpop.permute.xlu0 %1072
        %1074 = vrot.lane.b32.xlu0 %v1061, 16
        %v1075 = vpop.permute.xlu0 %1074
        %1076 = vrot.lane.b32.xlu0 %v1062, 16
        %v1077 = vpop.permute.xlu0 %1076
        %1078 = vrot.lane.b32.xlu0 %v1063, 16
        %v1079 = vpop.permute.xlu0 %1078
        %v1088 = vunpack.c.l.b16 %v822
        %v1089 = vunpack.c.l.b16 %v824
        %v1090 = vunpack.c.l.b16 %v826
        %v1091 = vunpack.c.l.b16 %v828
        %v1092 = vunpack.c.l.b16 %v830
        %v1093 = vunpack.c.l.b16 %v832
        %v1094 = vunpack.c.l.b16 %v834
        %v1095 = vunpack.c.l.b16 %v836
        %v1096 = vpack.c.b16 %v1088, %v1008
        %v1097 = vpack.c.b16 %v1089, %v1009
        %v1098 = vpack.c.b16 %v1090, %v1010
        %v1099 = vpack.c.b16 %v1091, %v1011
        %v1100 = vpack.c.b16 %v1092, %v1012
        %v1101 = vpack.c.b16 %v1093, %v1013
        %v1102 = vpack.c.b16 %v1094, %v1014
        %v1103 = vpack.c.b16 %v1095, %v1015
        %v1105 = vshrl.u32 %v1096, 16
        %v1107 = vshll.u32 %v1096, 16
        %v1109 = vrot.slane %v1107, 1
        %v1110 = vor.u32 %v1105, %v1109
        %v1112 = vshrl.u32 %v1097, 16
        %v1114 = vshll.u32 %v1097, 16
        %v1116 = vrot.slane %v1114, 1
        %v1117 = vor.u32 %v1112, %v1116
        %v1119 = vshrl.u32 %v1098, 16
        %v1121 = vshll.u32 %v1098, 16
        %v1123 = vrot.slane %v1121, 1
        %v1124 = vor.u32 %v1119, %v1123
        %v1126 = vshrl.u32 %v1099, 16
        %v1128 = vshll.u32 %v1099, 16
        %v1130 = vrot.slane %v1128, 1
        %v1131 = vor.u32 %v1126, %v1130
        %v1133 = vshrl.u32 %v1100, 16
        %v1135 = vshll.u32 %v1100, 16
        %v1137 = vrot.slane %v1135, 1
        %v1138 = vor.u32 %v1133, %v1137
        %v1140 = vshrl.u32 %v1101, 16
        %v1142 = vshll.u32 %v1101, 16
        %v1144 = vrot.slane %v1142, 1
        %v1145 = vor.u32 %v1140, %v1144
        %v1147 = vshrl.u32 %v1102, 16
        %v1149 = vshll.u32 %v1102, 16
        %v1151 = vrot.slane %v1149, 1
        %v1152 = vor.u32 %v1147, %v1151
        %v1154 = vshrl.u32 %v1103, 16
        %v1156 = vshll.u32 %v1103, 16
        %v1158 = vrot.slane %v1156, 1
        %v1159 = vor.u32 %v1154, %v1158
        %1160 = vrot.lane.b32.xlu0 %v1110, 20
        %v1161 = vpop.permute.xlu0 %1160
        %1162 = vrot.lane.b32.xlu0 %v1117, 20
        %v1163 = vpop.permute.xlu0 %1162
        %1164 = vrot.lane.b32.xlu0 %v1124, 20
        %v1165 = vpop.permute.xlu0 %1164
        %1166 = vrot.lane.b32.xlu0 %v1131, 20
        %v1167 = vpop.permute.xlu0 %1166
        %1168 = vrot.lane.b32.xlu0 %v1138, 20
        %v1169 = vpop.permute.xlu0 %1168
        %1170 = vrot.lane.b32.xlu0 %v1145, 20
        %v1171 = vpop.permute.xlu0 %1170
        %1172 = vrot.lane.b32.xlu0 %v1152, 20
        %v1173 = vpop.permute.xlu0 %1172
        %1174 = vrot.lane.b32.xlu0 %v1159, 20
        %v1175 = vpop.permute.xlu0 %1174
        %v1177 = vunpack.c.l.b16 %v845
        %v1178 = vpack.c.b16 %v906, %v906
        %v1179 = vpack.c.b16 %v908, %v908
        %v1180 = vpack.c.b16 %v910, %v910
        %v1181 = vpack.c.b16 %v912, %v912
        %v1182 = vpack.c.b16 %v914, %v914
        %v1183 = vpack.c.b16 %v916, %v916
        %v1184 = vpack.c.b16 %v918, %v918
        %v1185 = vpack.c.b16 %v1177, %v1177
        %1186 = vrot.lane.b32.xlu0 %v1178, 24
        %v1187 = vpop.permute.xlu0 %1186
        %1188 = vrot.lane.b32.xlu0 %v1179, 24
        %v1189 = vpop.permute.xlu0 %1188
        %1190 = vrot.lane.b32.xlu0 %v1180, 24
        %v1191 = vpop.permute.xlu0 %1190
        %1192 = vrot.lane.b32.xlu0 %v1181, 24
        %v1193 = vpop.permute.xlu0 %1192
        %1194 = vrot.lane.b32.xlu0 %v1182, 24
        %v1195 = vpop.permute.xlu0 %1194
        %1196 = vrot.lane.b32.xlu0 %v1183, 24
        %v1197 = vpop.permute.xlu0 %1196
        %1198 = vrot.lane.b32.xlu0 %v1184, 24
        %v1199 = vpop.permute.xlu0 %1198
        %1200 = vrot.lane.b32.xlu0 %v1185, 24
        %v1201 = vpop.permute.xlu0 %1200
        %v1203 = vunpack.c.l.b16 %v847
        %v1204 = vpack.c.b16 %v1203, %v1203
        %1205 = vrot.lane.b32.xlu0 %v865, 28
        %v1206 = vpop.permute.xlu0 %1205
        %1207 = vrot.lane.b32.xlu0 %v866, 28
        %v1208 = vpop.permute.xlu0 %1207
        %1209 = vrot.lane.b32.xlu0 %v867, 28
        %v1210 = vpop.permute.xlu0 %1209
        %1211 = vrot.lane.b32.xlu0 %v868, 28
        %v1212 = vpop.permute.xlu0 %1211
        %1213 = vrot.lane.b32.xlu0 %v869, 28
        %v1214 = vpop.permute.xlu0 %1213
        %1215 = vrot.lane.b32.xlu0 %v870, 28
        %v1216 = vpop.permute.xlu0 %1215
        %1217 = vrot.lane.b32.xlu0 %v871, 28
        %v1218 = vpop.permute.xlu0 %1217
        %1219 = vrot.lane.b32.xlu0 %v1204, 28
        %v1220 = vpop.permute.xlu0 %1219
        %v1222 = vunpack.c.l.b16 %v846
        %v1223 = vpack.c.b16 %v1222, %v1177
        %v1225 = vshrl.u32 %v1223, 16
        %v1227 = vshll.u32 %v1223, 16
        %v1229 = vrot.slane %v1227, 1
        %v1230 = vor.u32 %v1225, %v1229
        %1231 = vrot.lane.b32.xlu0 %v941, 32
        %v1232 = vpop.permute.xlu0 %1231
        %1233 = vrot.lane.b32.xlu0 %v948, 32
        %v1234 = vpop.permute.xlu0 %1233
        %1235 = vrot.lane.b32.xlu0 %v955, 32
        %v1236 = vpop.permute.xlu0 %1235
        %1237 = vrot.lane.b32.xlu0 %v962, 32
        %v1238 = vpop.permute.xlu0 %1237
        %1239 = vrot.lane.b32.xlu0 %v969, 32
        %v1240 = vpop.permute.xlu0 %1239
        %1241 = vrot.lane.b32.xlu0 %v976, 32
        %v1242 = vpop.permute.xlu0 %1241
        %1243 = vrot.lane.b32.xlu0 %v983, 32
        %v1244 = vpop.permute.xlu0 %1243
        %1245 = vrot.lane.b32.xlu0 %v1230, 32
        %v1246 = vpop.permute.xlu0 %1245
        %vm1247 = vcmask 31744
        %v1250 = vsel %vm1247, %v797, %v873
        %v1253 = vsel %vm1247, %v799, %v875
        %v1256 = vsel %vm1247, %v801, %v877
        %v1259 = vsel %vm1247, %v803, %v879
        %v1262 = vsel %vm1247, %v805, %v881
        %v1265 = vsel %vm1247, %v807, %v883
        %v1268 = vsel %vm1247, %v809, %v885
        %v1271 = vsel %vm1247, %v811, %v887
        %vm1272 = vcmask 64512
        %v1274 = vsel %vm1272, %v1250, %v985
        %v1276 = vsel %vm1272, %v1253, %v987
        %v1278 = vsel %vm1272, %v1256, %v989
        %v1280 = vsel %vm1272, %v1259, %v991
        %v1282 = vsel %vm1272, %v1262, %v993
        %v1284 = vsel %vm1272, %v1265, %v995
        %v1286 = vsel %vm1272, %v1268, %v997
        %v1288 = vsel %vm1272, %v1271, %v999
        %vm1289 = vcmask 97280
        %v1291 = vsel %vm1289, %v1274, %v1025
        %v1293 = vsel %vm1289, %v1276, %v1027
        %v1295 = vsel %vm1289, %v1278, %v1029
        %v1297 = vsel %vm1289, %v1280, %v1031
        %v1299 = vsel %vm1289, %v1282, %v1033
        %v1301 = vsel %vm1289, %v1284, %v1035
        %v1303 = vsel %vm1289, %v1286, %v1037
        %v1305 = vsel %vm1289, %v1288, %v1039
        %vm1306 = vcmask 130048
        %v1308 = vsel %vm1306, %v1291, %v1065
        %v1310 = vsel %vm1306, %v1293, %v1067
        %v1312 = vsel %vm1306, %v1295, %v1069
        %v1314 = vsel %vm1306, %v1297, %v1071
        %v1316 = vsel %vm1306, %v1299, %v1073
        %v1318 = vsel %vm1306, %v1301, %v1075
        %v1320 = vsel %vm1306, %v1303, %v1077
        %v1322 = vsel %vm1306, %v1305, %v1079
        %vm1323 = vcmask 162816
        %v1325 = vsel %vm1323, %v1308, %v1161
        %v1327 = vsel %vm1323, %v1310, %v1163
        %v1329 = vsel %vm1323, %v1312, %v1165
        %v1331 = vsel %vm1323, %v1314, %v1167
        %v1333 = vsel %vm1323, %v1316, %v1169
        %v1335 = vsel %vm1323, %v1318, %v1171
        %v1337 = vsel %vm1323, %v1320, %v1173
        %v1339 = vsel %vm1323, %v1322, %v1175
        %vm1340 = vcmask 195584
        %v1342 = vsel %vm1340, %v1325, %v1187
        %v1344 = vsel %vm1340, %v1327, %v1189
        %v1346 = vsel %vm1340, %v1329, %v1191
        %v1348 = vsel %vm1340, %v1331, %v1193
        %v1350 = vsel %vm1340, %v1333, %v1195
        %v1352 = vsel %vm1340, %v1335, %v1197
        %v1354 = vsel %vm1340, %v1337, %v1199
        %v1356 = vsel %vm1340, %v1339, %v1201
        %vm1357 = vcmask 228352
        %v1359 = vsel %vm1357, %v1342, %v1206
        %v1361 = vsel %vm1357, %v1344, %v1208
        %v1363 = vsel %vm1357, %v1346, %v1210
        %v1365 = vsel %vm1357, %v1348, %v1212
        %v1367 = vsel %vm1357, %v1350, %v1214
        %v1369 = vsel %vm1357, %v1352, %v1216
        %v1371 = vsel %vm1357, %v1354, %v1218
        %v1373 = vsel %vm1357, %v1356, %v1220
        %vm1374 = vcmask 261120
        %v1376 = vsel %vm1374, %v1359, %v1232
        %v1378 = vsel %vm1374, %v1361, %v1234
        %v1380 = vsel %vm1374, %v1363, %v1236
        %v1382 = vsel %vm1374, %v1365, %v1238
        %v1384 = vsel %vm1374, %v1367, %v1240
        %v1386 = vsel %vm1374, %v1369, %v1242
        %v1388 = vsel %vm1374, %v1371, %v1244
        %v1390 = vsel %vm1374, %v1373, %v1246
        %v1391 = vld [vmem:[%s2] sm:$0xf]
        %v1392 = vld [vmem:[%s2 + $0x4] sm:$0xf]
        %v1393 = vld [vmem:[%s2 + $0x8] sm:$0xf]
        %v1394 = vld [vmem:[%s2 + $0xc] sm:$0xf]
        %v1395 = vld [vmem:[%s2 + $0x10] sm:$0x3]
        %v1404 = vunpack.c.l.b16 %v1376
        %v1405 = vunpack.c.l.b16 %v1378
        %v1406 = vunpack.c.l.b16 %v1380
        %v1407 = vunpack.c.l.b16 %v1382
        %v1408 = vunpack.c.l.b16 %v1384
        %v1409 = vunpack.c.l.b16 %v1386
        %v1410 = vunpack.c.l.b16 %v1388
        %v1411 = vunpack.c.l.b16 %v1390
        %v1412 = vpack.c.b16 %v1405, %v1404
        %v1413 = vpack.c.b16 %v1407, %v1406
        %v1414 = vpack.c.b16 %v1409, %v1408
        %v1415 = vpack.c.b16 %v1411, %v1410
        %v1421 = vunpack.c.l.b16 %v1391
        %v1422 = vunpack.c.l.b16 %v1392
        %v1423 = vunpack.c.l.b16 %v1393
        %v1424 = vunpack.c.l.b16 %v1394
        %v1425 = vunpack.c.l.b16 %v1395
        %v1426 = vpack.c.b16 %v1422, %v1421
        %v1427 = vpack.c.b16 %v1424, %v1423
        %v1428 = vpack.c.b16 %v1425, %v1425
        %vm1431 = vcmask 293888
        %v1433 = vsel %vm1431, %v1412, 0
        %v1436 = vsel %vm1431, %v1413, 0
        %v1439 = vsel %vm1431, %v1414, 0
        %v1442 = vsel %vm1431, %v1415, 0
        %vm1444 = vcmask 1041408
        %v1446 = vsel %vm1444, %v1428, 0
        %1448 = vmatprep.subr.bf16.mxu0 0
        %1449 = vmatpush1.bf16.msra.mxu0 0
        %1450 = vmatprep.subr.bf16.mxu0 0
        %1451 = vmatpush1.bf16.msra.mxu0 0
        %1452 = vmatprep.subr.bf16.mxu0 0
        %1453 = vmatpush1.bf16.msra.mxu0 0
        %1454 = vmatprep.subr.bf16.mxu0 0
        %1455 = vmatpush1.bf16.msra.mxu0 0
        %1456 = vmatprep.subr.bf16.mxu0 0
        %1457 = vmatpush1.bf16.msra.mxu0 0
        %1458 = vmatprep.subr.bf16.mxu0 0
        %1459 = vmatpush1.bf16.msra.mxu0 %v1446
        %1460 = vmatprep.subr.bf16.mxu0 0
        %1461 = vmatpush1.bf16.msra.mxu0 %v1427
        %1462 = vmatprep.subr.bf16.mxu0 0
        %1463 = vmatpush1.bf16.msra.mxu0 %v1426
        %1464 = vmatprep.subr.bf16.mxu0 0
        %1465 = vmatpush2.bf16.msra.mxu0 0
        %1466 = vmatprep.subr.bf16.mxu0 0
        %1467 = vmatpush2.bf16.msra.mxu0 0
        %1468 = vmatprep.subr.bf16.mxu0 0
        %1469 = vmatpush2.bf16.msra.mxu0 0
        %1470 = vmatprep.subr.bf16.mxu0 0
        %1471 = vmatpush2.bf16.msra.mxu0 0
        %1472 = vmatprep.subr.bf16.mxu0 0
        %1473 = vmatpush2.bf16.msra.mxu0 0
        %1474 = vmatprep.subr.bf16.mxu0 0
        %1475 = vmatpush2.bf16.msra.mxu0 0
        %1476 = vmatprep.subr.bf16.mxu0 0
        %1477 = vmatpush2.bf16.msra.mxu0 0
        %1478 = vmatprep.subr.bf16.mxu0 0
        %1479 = vmatpush2.bf16.msra.mxu0 0
        %1480 = vmatprep.mubr.bf16.mxu0 0
        %1481 = vmatmul.mubr.bf16.gmra.mxu0 %v1433
        %v1482 = vpop.f32.mrf.mxu0
        %v1483 = vadd.f32 0.0, %v1482
        %v1484 = vpop.f32.mrf.mxu0
        %v1485 = vpop.f32.mrf.mxu0
        %v1486 = vadd.f32 0.0, %v1485
        %v1487 = vpop.f32.mrf.mxu0
        %1488 = vmatprep.mubr.bf16.mxu0 0
        %1489 = vmatmul.mubr.bf16.gmra.mxu0 %v1436
        %v1490 = vpop.f32.mrf.mxu0
        %v1491 = vadd.f32 0.0, %v1490
        %v1492 = vpop.f32.mrf.mxu0
        %v1493 = vpop.f32.mrf.mxu0
        %v1494 = vadd.f32 0.0, %v1493
        %v1495 = vpop.f32.mrf.mxu0
        %1496 = vmatprep.mubr.bf16.mxu0 0
        %1497 = vmatmul.mubr.bf16.gmra.mxu0 %v1439
        %v1498 = vpop.f32.mrf.mxu0
        %v1499 = vadd.f32 0.0, %v1498
        %v1500 = vpop.f32.mrf.mxu0
        %v1501 = vpop.f32.mrf.mxu0
        %v1502 = vadd.f32 0.0, %v1501
        %v1503 = vpop.f32.mrf.mxu0
        %1504 = vmatprep.mubr.bf16.mxu0 0
        %1505 = vmatmul.mubr.bf16.gmra.mxu0 %v1442
        %v1506 = vpop.f32.mrf.mxu0
        %v1507 = vadd.f32 0.0, %v1506
        %v1508 = vpop.f32.mrf.mxu0
        %v1509 = vpop.f32.mrf.mxu0
        %v1510 = vadd.f32 0.0, %v1509
        %v1511 = vpop.f32.mrf.mxu0
        %1512 = vdwg.mxu0
        %v1513 = vpack.c.bf16 %v1483, %v1483
        %v1514 = vpack.c.bf16 %v1486, %v1486
        %v1515 = vpack.c.bf16 %v1491, %v1491
        %v1516 = vpack.c.bf16 %v1494, %v1494
        %v1517 = vpack.c.bf16 %v1499, %v1499
        %v1518 = vpack.c.bf16 %v1502, %v1502
        %v1519 = vpack.c.bf16 %v1507, %v1507
        %v1520 = vpack.c.bf16 %v1510, %v1510
        %vm1521 = vcmask 60416
        %1522 = vst.msk [vmem:[%s782] sm:$0xf] %vm1521, %v1513
        %1523 = vst.msk [vmem:[%s782 + $0x4] sm:$0xf] %vm1521, %v1514
        %1524 = vst.msk [vmem:[%s782 + $0x8] sm:$0xf] %vm1521, %v1515
        %1525 = vst.msk [vmem:[%s782 + $0xc] sm:$0xf] %vm1521, %v1516
        %1526 = vst.msk [vmem:[%s782 + $0x10] sm:$0xf] %vm1521, %v1517
        %1527 = vst.msk [vmem:[%s782 + $0x14] sm:$0xf] %vm1521, %v1518
        %1528 = vst.msk [vmem:[%s782 + $0x18] sm:$0xf] %vm1521, %v1519
        %1529 = vst.msk [vmem:[%s782 + $0x1c] sm:$0xf] %vm1521, %v1520
        %v1530 = vsel %vm1272, %v1483, 0.0
        %v1531 = vsel %vm1272, %v1486, 0.0
        %v1532 = vadd.f32 %v1530, %v1531
        %v1533 = vsel %vm1272, %v1491, 0.0
        %v1534 = vadd.f32 %v1532, %v1533
        %v1535 = vsel %vm1272, %v1494, 0.0
        %v1536 = vadd.f32 %v1534, %v1535
        %v1537 = vsel %vm1272, %v1499, 0.0
        %v1538 = vadd.f32 %v1536, %v1537
        %v1539 = vsel %vm1272, %v1502, 0.0
        %v1540 = vadd.f32 %v1538, %v1539
        %v1541 = vsel %vm1272, %v1507, 0.0
        %v1542 = vadd.f32 %v1540, %v1541
        %v1543 = vsel %vm1272, %v1510, 0.0
        %v1544 = vadd.f32 %v1542, %v1543
        %v1545 = vrot.slane %v1544, 4
        %v1546 = vadd.f32 %v1544, %v1545
        %v1547 = vrot.slane %v1546, 2
        %v1548 = vadd.f32 %v1546, %v1547
        %v1549 = vrot.slane %v1548, 1
        %v1550 = vadd.f32 %v1548, %v1549
        %vm1551 = vcmask 57344
        %1552 = vst.msk [vmem:[%s789] sm:$0x1] %vm1551, %v1550
        %v1553 = vmul.f32 %v1483, %v1483
        %v1554 = vmul.f32 %v1486, %v1486
        %v1555 = vmul.f32 %v1491, %v1491
        %v1556 = vmul.f32 %v1494, %v1494
        %v1557 = vmul.f32 %v1499, %v1499
        %v1558 = vmul.f32 %v1502, %v1502
        %v1559 = vmul.f32 %v1507, %v1507
        %v1560 = vmul.f32 %v1510, %v1510
        %v1561 = vsel %vm1272, %v1553, 0.0
        %v1562 = vsel %vm1272, %v1554, 0.0
        %v1563 = vadd.f32 %v1561, %v1562
        %v1564 = vsel %vm1272, %v1555, 0.0
        %v1565 = vadd.f32 %v1563, %v1564
        %v1566 = vsel %vm1272, %v1556, 0.0
        %v1567 = vadd.f32 %v1565, %v1566
        %v1568 = vsel %vm1272, %v1557, 0.0
        %v1569 = vadd.f32 %v1567, %v1568
        %v1570 = vsel %vm1272, %v1558, 0.0
        %v1571 = vadd.f32 %v1569, %v1570
        %v1572 = vsel %vm1272, %v1559, 0.0
        %v1573 = vadd.f32 %v1571, %v1572
        %v1574 = vsel %vm1272, %v1560, 0.0
        %v1575 = vadd.f32 %v1573, %v1574
        %v1576 = vrot.slane %v1575, 4
        %v1577 = vadd.f32 %v1575, %v1576
        %v1578 = vrot.slane %v1577, 2
        %v1579 = vadd.f32 %v1577, %v1578
        %v1580 = vrot.slane %v1579, 1
        %v1581 = vadd.f32 %v1579, %v1580
        %1582 = vst.msk [vmem:[%s795] sm:$0x1] %vm1551, %v1581
        %s1583 = smul.u32 8, %s22
        %p1584 = scmp.lt.s32.totalorder %s21, 1
        %s1585 = scalar_select %p1584, %s21, 1
        %p1586 = scmp.lt.s32.totalorder %s1583, 7
        %s1587 = scalar_select %p1586, %s1583, 7
        %s1588 = smul.addr %s1585, 8
        %s1589 = sadd.s32 %s1587, %s1588
        %s1590 = smul.addr %s1589, 4
        %s1591 = scalar_lea.vmem %s3, %s1590
        %p1592 = scmp.lt.s32.totalorder %s21, 1
        %s1593 = scalar_select %p1592, %s21, 1
        %p1594 = scmp.lt.s32.totalorder %s22, 0
        %s1595 = scalar_select %p1594, %s22, 0
        %s1596 = sadd.s32 %s1595, %s1593
        %s1597 = scalar_lea.vmem %s4, %s1596
        %p1598 = scmp.lt.s32.totalorder %s21, 1
        %s1599 = scalar_select %p1598, %s21, 1
        %p1600 = scmp.lt.s32.totalorder %s22, 0
        %s1601 = scalar_select %p1600, %s22, 0
        %s1602 = sadd.s32 %s1601, %s1599
        %s1603 = scalar_lea.vmem %s5, %s1602
        // Predicated region
        $region136: #{down_forward.2} parent=126 // pred_check
          %p1604 = pneg %p130
        $region137: #{down_forward.2} parent=126 // pred_check_branch
          %1606 = sbr.rel (%p1604) target = $region139
        $region138: #{down_forward.2} parent=126 // pred_region
          %s1607 = smul.u32 8, %s22
        $region139: #{down_forward.2} parent=126 // pred_fallthru
          _
        // Predicated region
        $region140: #{down_forward.2} parent=126 // pred_check
          %p1608 = pneg %p158
        $region141: #{down_forward.2} parent=126 // pred_check_branch
          %1610 = sbr.rel (%p1608) target = $region143
        $region142: #{down_forward.2} parent=126 // pred_region
          _
        $region143: #{down_forward.2} parent=126 // pred_fallthru
          _
        // Predicated region
        $region144: #{down_forward.2} parent=126 // pred_check
          %p1611 = pneg %p186
        $region145: #{down_forward.2} parent=126 // pred_check_branch
          %1613 = sbr.rel (%p1611) target = $region147
        $region146: #{down_forward.2} parent=126 // pred_region
          _
        $region147: #{down_forward.2} parent=126 // pred_fallthru
          _
      $region127: #{down_forward.2} parent=5 // pred_fallthru
        _
      %p1614 = scmp.le.s32.totalorder 2, %s12
      // Predicated region
      $region148: #{down_forward.2} parent=5 // pred_check
        %p1615 = pneg %p1614
      $region149: #{down_forward.2} parent=5 // pred_check_branch
        %1617 = sbr.rel (%p1615) target = $region151
      $region150: #{down_forward.2} parent=5 // pred_region
        %s1618 = ssub.s32 %s12, 2
        // Predicated region
        $region152: #{down_forward.2} parent=150 // pred_check
          %p1619 = pneg %p136
        $region153: #{down_forward.2} parent=150 // pred_check_branch
          %1621 = sbr.rel (%p1619) target = $region155
        $region154: #{down_forward.2} parent=150 // pred_region
          %s1622 = smul.u32 8, %s24
          %p1623 = scmp.lt.s32.totalorder %s23, 1
          %s1624 = scalar_select %p1623, %s23, 1
          %p1625 = scmp.lt.s32.totalorder %s1622, 7
          %s1626 = scalar_select %p1625, %s1622, 7
          %s1627 = smul.addr %s1624, 8
          %s1628 = sadd.s32 %s1626, %s1627
          %s1629 = smul.addr %s1628, 4
          %s1630 = scalar_lea.vmem %s3, %s1629
        $region155: #{down_forward.2} parent=150 // pred_fallthru
          _
        // Predicated region
        $region156: #{down_forward.2} parent=150 // pred_check
          %p1631 = pneg %p164
        $region157: #{down_forward.2} parent=150 // pred_check_branch
          %1633 = sbr.rel (%p1631) target = $region159
        $region158: #{down_forward.2} parent=150 // pred_region
          %p1634 = scmp.lt.s32.totalorder %s23, 1
          %s1635 = scalar_select %p1634, %s23, 1
          %p1636 = scmp.lt.s32.totalorder %s24, 0
          %s1637 = scalar_select %p1636, %s24, 0
          %s1638 = sadd.s32 %s1637, %s1635
          %s1639 = scalar_lea.vmem %s4, %s1638
        $region159: #{down_forward.2} parent=150 // pred_fallthru
          _
        // Predicated region
        $region160: #{down_forward.2} parent=150 // pred_check
          %p1640 = pneg %p192
        $region161: #{down_forward.2} parent=150 // pred_check_branch
          %1642 = sbr.rel (%p1640) target = $region163
        $region162: #{down_forward.2} parent=150 // pred_region
          %p1643 = scmp.lt.s32.totalorder %s23, 1
          %s1644 = scalar_select %p1643, %s23, 1
          %p1645 = scmp.lt.s32.totalorder %s24, 0
          %s1646 = scalar_select %p1645, %s24, 0
          %s1647 = sadd.s32 %s1646, %s1644
          %s1648 = scalar_lea.vmem %s5, %s1647
        $region163: #{down_forward.2} parent=150 // pred_fallthru
          _
      $region151: #{down_forward.2} parent=5 // pred_fallthru
        _
    $region6: #{down_forward.2} parent=1 // loop_footer
      %s16 = sadd.s32 1, %s12
    $region7: #{down_forward.2} parent=1 // loop_footer_branch
      %11 = sbr.rel target = $region3
    $region8: #{down_forward.2} parent=1 // loop_exit
      _

</llo_original>
